<compile_context>
chip_gen: v6e
topology: v6e:2x2x1
jax: 0.10.0
libtpu: 0.0.40
codegen_flags: <defaults>
</compile_context>

<pallas_src>
import functools

import jax
import jax.numpy as jnp
from jax import lax
from jax.experimental import pallas as pl
from jax.experimental.pallas import tpu as pltpu

IN_FEATURES = 64 * 64 * 3   # 12288
NUM_CLASSES = 6


def _linear_kernel(x_ref, w_ref, b_ref, o_ref):
    """out = x @ w.T + b for one batch tile, in a single MXU matmul."""
    # x_ref: (tb, K) f32, w_ref: (NUM_CLASSES, K) f32 (native torch layout),
    # b_ref: (1, NUM_CLASSES).  bf16 operands, f32 accumulation.
    x = x_ref[...].astype(jnp.bfloat16)
    w = w_ref[...].astype(jnp.bfloat16)
    out = lax.dot_general(
        x, w,
        dimension_numbers=(((1,), (1,)), ((), ())),   # contract K (last dim of both)
        preferred_element_type=jnp.float32,
    )
    o_ref[...] = (out + b_ref[...]).astype(o_ref.dtype)


def _round_up(n, m):
    return ((n + m - 1) // m) * m


@functools.partial(jax.jit, static_argnames=("tb", "min_pallas_batch"))
def linear_classifier_forward(x, w, b, *, tb=256, min_pallas_batch=64):
    """
    x: (B, 3, 64, 64) float32
    w: (NUM_CLASSES, IN_FEATURES)  -- torch nn.Linear weight layout (kept as-is)
    b: (NUM_CLASSES,)
    returns: (B, NUM_CLASSES)
    """
    B = x.shape[0]
    # Same flattening as torch .view(B, -1); a bitcast for contiguous NCHW x.
    # TODO(synk): if x ever arrives channels-last upstream, fix the producer
    # layout instead of paying a relayout pass here.
    x_flat = x.reshape(B, -1)
    K = x_flat.shape[1]

    # Tiny batches: a sub-megabyte matmul is dominated by launch/pipeline
    # overhead; plain XLA is as fast and avoids VMEM plumbing.
    if B < min_pallas_batch:
        return x_flat @ w.T + b

    b2 = b.reshape(1, NUM_CLASSES)

    # Batch tile: multiple of 8 (sublane), <= tb, and small enough that the
    # grid has >= 2 blocks so the "parallel" axis can use both v7x TensorCores.
    tb_eff = max(8, min(tb, _round_up(pl.cdiv(B, 2), 8)))
    grid = (pl.cdiv(B, tb_eff),)   # ragged last block handled by Pallas masking

    # VMEM sized to actual use: double-buffered x tiles + resident w + slack.
    vmem_bytes = min(2 * tb_eff * K * 4 + 2 * 8 * K * 4 + (8 << 20), 48 << 20)

    return pl.pallas_call(
        _linear_kernel,
        out_shape=jax.ShapeDtypeStruct((B, NUM_CLASSES), x.dtype),
        grid=grid,
        in_specs=[
            pl.BlockSpec((tb_eff, K), lambda i: (i, 0)),           # x: streamed
            pl.BlockSpec((NUM_CLASSES, K), lambda i: (0, 0)),      # w: resident, native layout
            pl.BlockSpec((1, NUM_CLASSES), lambda i: (0, 0)),      # bias: resident
        ],
        out_specs=pl.BlockSpec((tb_eff, NUM_CLASSES), lambda i: (i, 0)),
        compiler_params=pltpu.CompilerParams(
            dimension_semantics=("parallel",),   # pure batch parallelism
            vmem_limit_bytes=vmem_bytes,
        ),
    )(x_flat, w, b2)


def init_params(key):
    """Deterministic init matching torch nn.Linear default: U(-1/sqrt(in), 1/sqrt(in))."""
    kw, kb = jax.random.split(key)
    bound = 1.0 / jnp.sqrt(jnp.float32(IN_FEATURES))
    w = jax.random.uniform(
        kw, (NUM_CLASSES, IN_FEATURES), jnp.float32, minval=-bound, maxval=bound
    )
    b = jax.random.uniform(
        kb, (NUM_CLASSES,), jnp.float32, minval=-bound, maxval=bound
    )
    return w, b


if __name__ == "__main__":
    key = jax.random.PRNGKey(0)
    kx, kp, kx2 = jax.random.split(key, 3)
    w, b = init_params(kp)

    # 1) Pallas path: B=24 gives a 2-block grid with a ragged last block
    #    (tb_eff=16, blocks cover rows 0..15 and 16..31, B=24) — exercises the
    #    no-pad masked path and megacore-friendly tiling.
    B = 24
    x = jax.random.normal(kx, (B, 3, 64, 64), jnp.float32)
    out = jax.block_until_ready(linear_classifier_forward(x, w, b, min_pallas_batch=1))
    ref = x.reshape(B, -1) @ w.T + b
    assert out.shape == (B, NUM_CLASSES), out.shape
    # bf16 operands over a K=12288 reduction (f32 accumulation) -> looser tol.
    assert jnp.allclose(out, ref, atol=5e-2, rtol=5e-2), jnp.max(jnp.abs(out - ref))

    # 2) Tiny-batch path (the homework demo shape, B=2): XLA fallback, exact.
    B2 = 2
    x2 = jax.random.normal(kx2, (B2, 3, 64, 64), jnp.float32)
    out2 = jax.block_until_ready(linear_classifier_forward(x2, w, b))
    ref2 = x2.reshape(B2, -1) @ w.T + b
    assert out2.shape == (B2, NUM_CLASSES), out2.shape
    assert jnp.allclose(out2, ref2, atol=1e-4, rtol=1e-4)

    print("KERNEL_OK")
</pallas_src>

<mosaic_0001>
module attributes {stable_mosaic.version = 11 : i64} {
  func.func @_linear_kernel(%arg0: i32, %arg1: memref<16x12288xf32, #tpu.memory_space<vmem>>, %arg2: memref<6x12288xf32, #tpu.memory_space<vmem>>, %arg3: memref<1x6xf32, #tpu.memory_space<vmem>>, %arg4: memref<16x6xf32, #tpu.memory_space<vmem>>) attributes {dimension_semantics = [#tpu.dimension_semantics<parallel>], iteration_bounds = array<i64: 2>, scalar_prefetch = 0 : i64, scratch_operands = 0 : i64, tpu.core_type = #tpu.core_type<tc>, window_params = [{transform_indices = @transform_0, window_bounds = array<i64: 16, 12288>}, {pipeline_mode = #tpu.pipeline_mode<synchronous>, transform_indices = @transform_1, window_bounds = array<i64: 6, 12288>}, {pipeline_mode = #tpu.pipeline_mode<synchronous>, transform_indices = @transform_2, window_bounds = array<i64: 1, 6>}, {transform_indices = @transform_3, window_bounds = array<i64: 16, 6>}]} {
    %c0 = arith.constant 0 : index
    %c0_0 = arith.constant 0 : index
    %0 = vector.load %arg1[%c0, %c0_0] : memref<16x12288xf32, #tpu.memory_space<vmem>>, vector<16x12288xf32>
    %1 = arith.truncf %0 : vector<16x12288xf32> to vector<16x12288xbf16>
    %c0_1 = arith.constant 0 : index
    %c0_2 = arith.constant 0 : index
    %2 = vector.load %arg2[%c0_1, %c0_2] : memref<6x12288xf32, #tpu.memory_space<vmem>>, vector<6x12288xf32>
    %3 = arith.truncf %2 : vector<6x12288xf32> to vector<6x12288xbf16>
    %cst = arith.constant dense<0.000000e+00> : vector<16x6xf32>
    %4 = tpu.matmul %1, %3, %cst {dimension_numbers = #tpu.dot_dimension_numbers<[1], [1], [0], [0], [0, 0, 1, 0], [], []>} : vector<16x12288xbf16>, vector<6x12288xbf16>, vector<16x6xf32> -> vector<16x6xf32>
    %c0_3 = arith.constant 0 : index
    %c0_4 = arith.constant 0 : index
    %5 = vector.load %arg3[%c0_3, %c0_4] : memref<1x6xf32, #tpu.memory_space<vmem>>, vector<1x6xf32>
    %6 = vector.broadcast %5 : vector<1x6xf32> to vector<16x6xf32>
    %7 = arith.addf %4, %6 : vector<16x6xf32>
    %c0_5 = arith.constant 0 : index
    %c0_6 = arith.constant 0 : index
    %8 = vector.load %arg4[%c0_5, %c0_6] : memref<16x6xf32, #tpu.memory_space<vmem>>, vector<16x6xf32>
    tpu.vector_store %arg4[%c0_5, %c0_6], %7 {strides = array<i32>} : memref<16x6xf32, #tpu.memory_space<vmem>>, vector<16x6xf32>,
    return
  }
  func.func @transform_0(%arg0: i32) -> (i32, i32) {
    %c0_i32 = arith.constant 0 : i32
    %c0_i32_0 = arith.constant 0 : i32
    return %arg0, %c0_i32 : i32, i32
  }
  func.func @transform_1(%arg0: i32) -> (i32, i32) {
    %c0_i32 = arith.constant 0 : i32
    %c0_i32_0 = arith.constant 0 : i32
    %c0_i32_1 = arith.constant 0 : i32
    return %c0_i32, %c0_i32_0 : i32, i32
  }
  func.func @transform_2(%arg0: i32) -> (i32, i32) {
    %c0_i32 = arith.constant 0 : i32
    %c0_i32_0 = arith.constant 0 : i32
    %c0_i32_1 = arith.constant 0 : i32
    return %c0_i32, %c0_i32_0 : i32, i32
  }
  func.func @transform_3(%arg0: i32) -> (i32, i32) {
    %c0_i32 = arith.constant 0 : i32
    %c0_i32_0 = arith.constant 0 : i32
    return %arg0, %c0_i32 : i32, i32
  }
}

</mosaic_0001>

<llo_original>
// kernel: linear_classifier_forward.1
$region0: #{linear_classifier_forward.1}
  #allocation0 [shape = 'u32[]', space=smem, size = 0x4, offset = 0x4, fixed_abs, tag = 'smem constant byte address 0x4 - core index']
  #allocation1 [shape = 'u32[144,128]{1,0:T(1,128)}', space=vmem, size = 0x12000, scoped, tag = 'internal scratch']
  %s0 = inlined_call_operand.vmem [shape: f32[24,12288], index: 0, kind: input, shape index: {}]
  %s1 = inlined_call_operand.vmem [shape: f32[6,12288], index: 1, kind: input, shape index: {}]
  %s2 = inlined_call_operand.vmem [shape: f32[1,6], index: 2, kind: input, shape index: {}]
  %s3 = inlined_call_operand.vmem [shape: f32[24,6], index: 3, kind: output, shape index: {}]
  %s4 = sld [smem:[#allocation0]]
  $region93: #{linear_classifier_forward.1} parent=0
    _
  %s6 = ssub.s32 1, %s4
  %s7 = scalar_select 0, %s6, %s4
  $region1: #{linear_classifier_forward.1} parent=0
    #allocation2 [shape = 'u8[16384]{0}', space=vmem, size = 0x4000, scoped, tag = 'output window, operand 0']
    loop: start=0, step=1, limit=4
    $region2: #{linear_classifier_forward.1} parent=1 // loop_pre_header
      _
    $region3: #{linear_classifier_forward.1} parent=1 // loop_header
      %s9 = sphi 0, %s13
      %p10 = scmp.ge.s32.totalorder %s9, 4
      %s19 = sphi 0, %s21
      %s22 = sphi 0, %s19
      %s23 = sphi 0, %s22
      %s39 = sphi 0, %s23
      %s43 = sphi 0, %s43
      %s45 = sphi 0, %s43
      %s46 = sphi 0, %s45
      %s60 = sphi 0, %s46
      %s64 = sphi 0, %s64
      %s66 = sphi 0, %s64
      %s67 = sphi 0, %s66
      %s81 = sphi 0, %s67
      %s87 = sphi 0, %s89
      %s90 = sphi 0, %s87
      %s91 = sphi 0, %s90
      %s107 = sphi 0, %s91
    $region4: #{linear_classifier_forward.1} parent=1 // loop_header_branch
      %12 = sbr.rel (%p10) target = $region8
    $region5: #{linear_classifier_forward.1} parent=1 // loop_body
      %s14 = ssub.s32 %s9, 1
      %s15 = ssub.s32 %s9, 2
      %s16 = sadd.s32 %s9, 1
      %s17 = ssub.s32 %s9, %s16
      %p18 = scmp.eq.s32.totalorder %s17, 0
      %s20 = sadd.s32 %s19, 1
      %s21 = scalar_select %p18, %s19, %s20
      %p24 = pneg %p18
      %p25 = scmp.eq.s32.totalorder %s9, 1
      %p26 = por %p24, %p25
      %p27 = scmp.ne.s32.totalorder %s19, %s22
      %p28 = scmp.eq.s32.totalorder %s9, 0
      %p29 = por %p27, %p28
      %p30 = scmp.ne.s32.totalorder %s19, %s22
      %p31 = scmp.eq.s32.totalorder %s14, 1
      %p32 = por %p30, %p31
      %p33 = scmp.ne.s32.totalorder %s22, %s23
      %p34 = scmp.eq.s32.totalorder %s14, 0
      %p35 = por %p33, %p34
      %p36 = scmp.ne.s32.totalorder %s22, %s23
      %p37 = scmp.eq.s32.totalorder %s15, 1
      %p38 = por %p36, %p37
      %p40 = scmp.ne.s32.totalorder %s23, %s39
      %p41 = scmp.eq.s32.totalorder %s15, 0
      %p42 = por %p40, %p41
      %s44 = sadd.s32 %s43, 1
      %p47 = scmp.eq.s32.totalorder %s9, 1
      %p48 = scmp.ne.s32.totalorder %s43, %s45
      %p49 = scmp.eq.s32.totalorder %s9, 0
      %p50 = por %p48, %p49
      %p51 = scmp.ne.s32.totalorder %s43, %s45
      %p52 = scmp.eq.s32.totalorder %s14, 1
      %p53 = por %p51, %p52
      %p54 = scmp.ne.s32.totalorder %s45, %s46
      %p55 = scmp.eq.s32.totalorder %s14, 0
      %p56 = por %p54, %p55
      %p57 = scmp.ne.s32.totalorder %s45, %s46
      %p58 = scmp.eq.s32.totalorder %s15, 1
      %p59 = por %p57, %p58
      %p61 = scmp.ne.s32.totalorder %s46, %s60
      %p62 = scmp.eq.s32.totalorder %s15, 0
      %p63 = por %p61, %p62
      %s65 = sadd.s32 %s64, 1
      %p68 = scmp.eq.s32.totalorder %s9, 1
      %p69 = scmp.ne.s32.totalorder %s64, %s66
      %p70 = scmp.eq.s32.totalorder %s9, 0
      %p71 = por %p69, %p70
      %p72 = scmp.ne.s32.totalorder %s64, %s66
      %p73 = scmp.eq.s32.totalorder %s14, 1
      %p74 = por %p72, %p73
      %p75 = scmp.ne.s32.totalorder %s66, %s67
      %p76 = scmp.eq.s32.totalorder %s14, 0
      %p77 = por %p75, %p76
      %p78 = scmp.ne.s32.totalorder %s66, %s67
      %p79 = scmp.eq.s32.totalorder %s15, 1
      %p80 = por %p78, %p79
      %p82 = scmp.ne.s32.totalorder %s67, %s81
      %p83 = scmp.eq.s32.totalorder %s15, 0
      %p84 = por %p82, %p83
      %s85 = ssub.s32 %s9, %s16
      %p86 = scmp.eq.s32.totalorder %s85, 0
      %s88 = sadd.s32 %s87, 1
      %s89 = scalar_select %p86, %s87, %s88
      %p92 = pneg %p86
      %p93 = scmp.eq.s32.totalorder %s9, 1
      %p94 = por %p92, %p93
      %p95 = scmp.ne.s32.totalorder %s87, %s90
      %p96 = scmp.eq.s32.totalorder %s9, 0
      %p97 = por %p95, %p96
      %p98 = scmp.ne.s32.totalorder %s87, %s90
      %p99 = scmp.eq.s32.totalorder %s14, 1
      %p100 = por %p98, %p99
      %p101 = scmp.ne.s32.totalorder %s90, %s91
      %p102 = scmp.eq.s32.totalorder %s14, 0
      %p103 = por %p101, %p102
      %p104 = scmp.ne.s32.totalorder %s90, %s91
      %p105 = scmp.eq.s32.totalorder %s15, 1
      %p106 = por %p104, %p105
      %p108 = scmp.ne.s32.totalorder %s91, %s107
      %p109 = scmp.eq.s32.totalorder %s15, 0
      %p110 = por %p108, %p109
      %p111 = scmp.le.s32.totalorder 1, %s9
      %p112 = scmp.lt.s32.totalorder %s9, 3
      %p113 = pnand %p111, %p112
      %p114 = pneg %p113
      // Predicated region
      $region9: #{linear_classifier_forward.1} parent=5 // pred_check
        _
      $region10: #{linear_classifier_forward.1} parent=5 // pred_check_branch
        %116 = sbr.rel (%p113) target = $region12
      $region11: #{linear_classifier_forward.1} parent=5 // pred_region
        %s117 = ssub.s32 %s9, 1
        // Predicated region
        $region13: #{linear_classifier_forward.1} parent=11 // pred_check
          %p118 = pneg %p56
        $region14: #{linear_classifier_forward.1} parent=11 // pred_check_branch
          %120 = sbr.rel (%p118) target = $region16
        $region15: #{linear_classifier_forward.1} parent=11 // pred_region
          _
        $region16: #{linear_classifier_forward.1} parent=11 // pred_fallthru
          _
        // Predicated region
        $region17: #{linear_classifier_forward.1} parent=11 // pred_check
          %p121 = pneg %p77
        $region18: #{linear_classifier_forward.1} parent=11 // pred_check_branch
          %123 = sbr.rel (%p121) target = $region20
        $region19: #{linear_classifier_forward.1} parent=11 // pred_region
          _
        $region20: #{linear_classifier_forward.1} parent=11 // pred_fallthru
          _
      $region12: #{linear_classifier_forward.1} parent=5 // pred_fallthru
        _
      %p124 = scmp.lt.s32.totalorder %s9, 2
      // Predicated region
      $region21: #{linear_classifier_forward.1} parent=5 // pred_check
        %p125 = pneg %p124
      $region22: #{linear_classifier_forward.1} parent=5 // pred_check_branch
        %127 = sbr.rel (%p125) target = $region24
      $region23: #{linear_classifier_forward.1} parent=5 // pred_region
        // Predicated region
        $region25: #{linear_classifier_forward.1} parent=23 // pred_check
          %p128 = pneg %p29
        $region26: #{linear_classifier_forward.1} parent=23 // pred_check_branch
          %130 = sbr.rel (%p128) target = $region28
        $region27: #{linear_classifier_forward.1} parent=23 // pred_region
          %s131 = smul.u32 2, %s9
          %s132 = ssub.s32 3, %s131
          %p133 = scmp.lt.s32.totalorder %s132, 2
          %s134 = scalar_select %p133, %s132, 2
          %s135 = smul.u32 128, %s134
          %s136 = smul.u32 %s135, 96
          %p137 = scmp.lt.s32.totalorder %s131, 2
          %s138 = scalar_select %p137, %s131, 2
          %s139 = smul.addr %s138, 96
          %s140 = smul.addr %s139, 8
          %s141 = scalar_lea.vmem %s0, %s140
          %s142 = smul.u32 2, %s9
          %s143 = ssub.s32 3, %s142
          %p144 = scmp.lt.s32.totalorder %s143, 2
          %s145 = scalar_select %p144, %s143, 2
          %s146 = smul.u32 128, %s145
          %s147 = smul.u32 %s146, 96
        $region28: #{linear_classifier_forward.1} parent=23 // pred_fallthru
          _
      $region24: #{linear_classifier_forward.1} parent=5 // pred_fallthru
        _
      %p148 = scmp.le.s32.totalorder 1, %s9
      %p149 = scmp.lt.s32.totalorder %s9, 3
      %p150 = pnand %p148, %p149
      %p151 = pneg %p150
      // Predicated region
      $region29: #{linear_classifier_forward.1} parent=5 // pred_check
        _
      $region30: #{linear_classifier_forward.1} parent=5 // pred_check_branch
        %153 = sbr.rel (%p150) target = $region32
      $region31: #{linear_classifier_forward.1} parent=5 // pred_region
        %s154 = ssub.s32 %s9, 1
        %s155 = smul.u32 2, %s14
        %s156 = ssub.s32 3, %s155
        %p157 = scmp.lt.s32.totalorder %s156, 2
        %s158 = scalar_select %p157, %s156, 2
        %s159 = smul.u32 128, %s158
        %s160 = smul.u32 %s159, 96
        %p161 = scmp.lt.s32.totalorder %s155, 2
        %s162 = scalar_select %p161, %s155, 2
        %s163 = smul.addr %s162, 96
        %s164 = smul.addr %s163, 8
        %s165 = scalar_lea.vmem %s0, %s164
        %p166 = pneg %p35
        %p167 = pneg %p32
        %p168 = pneg %p56
        %p169 = pneg %p53
        %p170 = pneg %p77
        %p171 = pneg %p74
        %p172 = pneg %p103
        %p173 = pneg %p100
        %s174 = sand.u32 %s90, 1
        %s175 = sand.u32 %s90, 1
        %s176 = smul.addr %s175, 16
        %s177 = scalar_lea.vmem [#allocation2], %s176
        %s178 = smul.u32 2, %s14
        %s179 = ssub.s32 3, %s178
        %p180 = scmp.lt.s32.totalorder %s179, 2
        %s181 = scalar_select %p180, %s179, 2
        %s182 = smul.u32 128, %s181
        %s183 = smul.u32 %s182, 96
        %p184 = scmp.lt.s32.totalorder %s178, 2
        %s185 = scalar_select %p184, %s178, 2
        %s186 = smul.addr %s185, 96
        %s187 = smul.addr %s186, 8
        %s188 = scalar_lea.vmem %s0, %s187
        %s189 = smul.u32 2, %s14
        %s190 = ssub.s32 3, %s189
        %p191 = scmp.lt.s32.totalorder %s190, 2
        %s192 = scalar_select %p191, %s190, 2
        %s193 = smul.u32 128, %s192
        %s194 = smul.u32 %s193, 96
        %s195 = smul.u32 2, %s14
        %s196 = ssub.s32 3, %s195
        %p197 = scmp.lt.s32.totalorder %s196, 2
        %s198 = scalar_select %p197, %s196, 2
        %s199 = smul.u32 128, %s198
        %v201 = vld [vmem:[%s188] sm:$0xff]
        %v202 = vld [vmem:[%s188 + $0x8] sm:$0xff]
        %v203 = vld [vmem:[%s188 + $0x10] sm:$0xff]
        %v204 = vld [vmem:[%s188 + $0x18] sm:$0xff]
        %v205 = vld [vmem:[%s188 + $0x20] sm:$0xff]
        %v206 = vld [vmem:[%s188 + $0x28] sm:$0xff]
        %v207 = vld [vmem:[%s188 + $0x30] sm:$0xff]
        %v208 = vld [vmem:[%s188 + $0x38] sm:$0xff]
        %v209 = vld [vmem:[%s188 + $0x40] sm:$0xff]
        %v210 = vld [vmem:[%s188 + $0x48] sm:$0xff]
        %v211 = vld [vmem:[%s188 + $0x50] sm:$0xff]
        %v212 = vld [vmem:[%s188 + $0x58] sm:$0xff]
        %v213 = vld [vmem:[%s188 + $0x60] sm:$0xff]
        %v214 = vld [vmem:[%s188 + $0x68] sm:$0xff]
        %v215 = vld [vmem:[%s188 + $0x70] sm:$0xff]
        %v216 = vld [vmem:[%s188 + $0x78] sm:$0xff]
        %v217 = vld [vmem:[%s188 + $0x80] sm:$0xff]
        %v218 = vld [vmem:[%s188 + $0x88] sm:$0xff]
        %v219 = vld [vmem:[%s188 + $0x90] sm:$0xff]
        %v220 = vld [vmem:[%s188 + $0x98] sm:$0xff]
        %v221 = vld [vmem:[%s188 + $0xa0] sm:$0xff]
        %v222 = vld [vmem:[%s188 + $0xa8] sm:$0xff]
        %v223 = vld [vmem:[%s188 + $0xb0] sm:$0xff]
        %v224 = vld [vmem:[%s188 + $0xb8] sm:$0xff]
        %v225 = vld [vmem:[%s188 + $0xc0] sm:$0xff]
        %v226 = vld [vmem:[%s188 + $0xc8] sm:$0xff]
        %v227 = vld [vmem:[%s188 + $0xd0] sm:$0xff]
        %v228 = vld [vmem:[%s188 + $0xd8] sm:$0xff]
        %v229 = vld [vmem:[%s188 + $0xe0] sm:$0xff]
        %v230 = vld [vmem:[%s188 + $0xe8] sm:$0xff]
        %v231 = vld [vmem:[%s188 + $0xf0] sm:$0xff]
        %v232 = vld [vmem:[%s188 + $0xf8] sm:$0xff]
        %v233 = vld [vmem:[%s188 + $0x100] sm:$0xff]
        %v234 = vld [vmem:[%s188 + $0x108] sm:$0xff]
        %v235 = vld [vmem:[%s188 + $0x110] sm:$0xff]
        %v236 = vld [vmem:[%s188 + $0x118] sm:$0xff]
        %v237 = vld [vmem:[%s188 + $0x120] sm:$0xff]
        %v238 = vld [vmem:[%s188 + $0x128] sm:$0xff]
        %v239 = vld [vmem:[%s188 + $0x130] sm:$0xff]
        %v240 = vld [vmem:[%s188 + $0x138] sm:$0xff]
        %v241 = vld [vmem:[%s188 + $0x140] sm:$0xff]
        %v242 = vld [vmem:[%s188 + $0x148] sm:$0xff]
        %v243 = vld [vmem:[%s188 + $0x150] sm:$0xff]
        %v244 = vld [vmem:[%s188 + $0x158] sm:$0xff]
        %v245 = vld [vmem:[%s188 + $0x160] sm:$0xff]
        %v246 = vld [vmem:[%s188 + $0x168] sm:$0xff]
        %v247 = vld [vmem:[%s188 + $0x170] sm:$0xff]
        %v248 = vld [vmem:[%s188 + $0x178] sm:$0xff]
        %v249 = vld [vmem:[%s188 + $0x180] sm:$0xff]
        %v250 = vld [vmem:[%s188 + $0x188] sm:$0xff]
        %v251 = vld [vmem:[%s188 + $0x190] sm:$0xff]
        %v252 = vld [vmem:[%s188 + $0x198] sm:$0xff]
        %v253 = vld [vmem:[%s188 + $0x1a0] sm:$0xff]
        %v254 = vld [vmem:[%s188 + $0x1a8] sm:$0xff]
        %v255 = vld [vmem:[%s188 + $0x1b0] sm:$0xff]
        %v256 = vld [vmem:[%s188 + $0x1b8] sm:$0xff]
        %v257 = vld [vmem:[%s188 + $0x1c0] sm:$0xff]
        %v258 = vld [vmem:[%s188 + $0x1c8] sm:$0xff]
        %v259 = vld [vmem:[%s188 + $0x1d0] sm:$0xff]
        %v260 = vld [vmem:[%s188 + $0x1d8] sm:$0xff]
        %v261 = vld [vmem:[%s188 + $0x1e0] sm:$0xff]
        %v262 = vld [vmem:[%s188 + $0x1e8] sm:$0xff]
        %v263 = vld [vmem:[%s188 + $0x1f0] sm:$0xff]
        %v264 = vld [vmem:[%s188 + $0x1f8] sm:$0xff]
        %v265 = vld [vmem:[%s188 + $0x200] sm:$0xff]
        %v266 = vld [vmem:[%s188 + $0x208] sm:$0xff]
        %v267 = vld [vmem:[%s188 + $0x210] sm:$0xff]
        %v268 = vld [vmem:[%s188 + $0x218] sm:$0xff]
        %v269 = vld [vmem:[%s188 + $0x220] sm:$0xff]
        %v270 = vld [vmem:[%s188 + $0x228] sm:$0xff]
        %v271 = vld [vmem:[%s188 + $0x230] sm:$0xff]
        %v272 = vld [vmem:[%s188 + $0x238] sm:$0xff]
        %v273 = vld [vmem:[%s188 + $0x240] sm:$0xff]
        %v274 = vld [vmem:[%s188 + $0x248] sm:$0xff]
        %v275 = vld [vmem:[%s188 + $0x250] sm:$0xff]
        %v276 = vld [vmem:[%s188 + $0x258] sm:$0xff]
        %v277 = vld [vmem:[%s188 + $0x260] sm:$0xff]
        %v278 = vld [vmem:[%s188 + $0x268] sm:$0xff]
        %v279 = vld [vmem:[%s188 + $0x270] sm:$0xff]
        %v280 = vld [vmem:[%s188 + $0x278] sm:$0xff]
        %v281 = vld [vmem:[%s188 + $0x280] sm:$0xff]
        %v282 = vld [vmem:[%s188 + $0x288] sm:$0xff]
        %v283 = vld [vmem:[%s188 + $0x290] sm:$0xff]
        %v284 = vld [vmem:[%s188 + $0x298] sm:$0xff]
        %v285 = vld [vmem:[%s188 + $0x2a0] sm:$0xff]
        %v286 = vld [vmem:[%s188 + $0x2a8] sm:$0xff]
        %v287 = vld [vmem:[%s188 + $0x2b0] sm:$0xff]
        %v288 = vld [vmem:[%s188 + $0x2b8] sm:$0xff]
        %v289 = vld [vmem:[%s188 + $0x2c0] sm:$0xff]
        %v290 = vld [vmem:[%s188 + $0x2c8] sm:$0xff]
        %v291 = vld [vmem:[%s188 + $0x2d0] sm:$0xff]
        %v292 = vld [vmem:[%s188 + $0x2d8] sm:$0xff]
        %v293 = vld [vmem:[%s188 + $0x2e0] sm:$0xff]
        %v294 = vld [vmem:[%s188 + $0x2e8] sm:$0xff]
        %v295 = vld [vmem:[%s188 + $0x2f0] sm:$0xff]
        %v296 = vld [vmem:[%s188 + $0x2f8] sm:$0xff]
        %v297 = vld [vmem:[%s188 + $0x300] sm:$0xff]
        %v298 = vld [vmem:[%s188 + $0x308] sm:$0xff]
        %v299 = vld [vmem:[%s188 + $0x310] sm:$0xff]
        %v300 = vld [vmem:[%s188 + $0x318] sm:$0xff]
        %v301 = vld [vmem:[%s188 + $0x320] sm:$0xff]
        %v302 = vld [vmem:[%s188 + $0x328] sm:$0xff]
        %v303 = vld [vmem:[%s188 + $0x330] sm:$0xff]
        %v304 = vld [vmem:[%s188 + $0x338] sm:$0xff]
        %v305 = vld [vmem:[%s188 + $0x340] sm:$0xff]
        %v306 = vld [vmem:[%s188 + $0x348] sm:$0xff]
        %v307 = vld [vmem:[%s188 + $0x350] sm:$0xff]
        %v308 = vld [vmem:[%s188 + $0x358] sm:$0xff]
        %v309 = vld [vmem:[%s188 + $0x360] sm:$0xff]
        %v310 = vld [vmem:[%s188 + $0x368] sm:$0xff]
        %v311 = vld [vmem:[%s188 + $0x370] sm:$0xff]
        %v312 = vld [vmem:[%s188 + $0x378] sm:$0xff]
        %v313 = vld [vmem:[%s188 + $0x380] sm:$0xff]
        %v314 = vld [vmem:[%s188 + $0x388] sm:$0xff]
        %v315 = vld [vmem:[%s188 + $0x390] sm:$0xff]
        %v316 = vld [vmem:[%s188 + $0x398] sm:$0xff]
        %v317 = vld [vmem:[%s188 + $0x3a0] sm:$0xff]
        %v318 = vld [vmem:[%s188 + $0x3a8] sm:$0xff]
        %v319 = vld [vmem:[%s188 + $0x3b0] sm:$0xff]
        %v320 = vld [vmem:[%s188 + $0x3b8] sm:$0xff]
        %v321 = vld [vmem:[%s188 + $0x3c0] sm:$0xff]
        %v322 = vld [vmem:[%s188 + $0x3c8] sm:$0xff]
        %v323 = vld [vmem:[%s188 + $0x3d0] sm:$0xff]
        %v324 = vld [vmem:[%s188 + $0x3d8] sm:$0xff]
        %v325 = vld [vmem:[%s188 + $0x3e0] sm:$0xff]
        %v326 = vld [vmem:[%s188 + $0x3e8] sm:$0xff]
        %v327 = vld [vmem:[%s188 + $0x3f0] sm:$0xff]
        %v328 = vld [vmem:[%s188 + $0x3f8] sm:$0xff]
        %v329 = vld [vmem:[%s188 + $0x400] sm:$0xff]
        %v330 = vld [vmem:[%s188 + $0x408] sm:$0xff]
        %v331 = vld [vmem:[%s188 + $0x410] sm:$0xff]
        %v332 = vld [vmem:[%s188 + $0x418] sm:$0xff]
        %v333 = vld [vmem:[%s188 + $0x420] sm:$0xff]
        %v334 = vld [vmem:[%s188 + $0x428] sm:$0xff]
        %v335 = vld [vmem:[%s188 + $0x430] sm:$0xff]
        %v336 = vld [vmem:[%s188 + $0x438] sm:$0xff]
        %v337 = vld [vmem:[%s188 + $0x440] sm:$0xff]
        %v338 = vld [vmem:[%s188 + $0x448] sm:$0xff]
        %v339 = vld [vmem:[%s188 + $0x450] sm:$0xff]
        %v340 = vld [vmem:[%s188 + $0x458] sm:$0xff]
        %v341 = vld [vmem:[%s188 + $0x460] sm:$0xff]
        %v342 = vld [vmem:[%s188 + $0x468] sm:$0xff]
        %v343 = vld [vmem:[%s188 + $0x470] sm:$0xff]
        %v344 = vld [vmem:[%s188 + $0x478] sm:$0xff]
        %v345 = vld [vmem:[%s188 + $0x480] sm:$0xff]
        %v346 = vld [vmem:[%s188 + $0x488] sm:$0xff]
        %v347 = vld [vmem:[%s188 + $0x490] sm:$0xff]
        %v348 = vld [vmem:[%s188 + $0x498] sm:$0xff]
        %v349 = vld [vmem:[%s188 + $0x4a0] sm:$0xff]
        %v350 = vld [vmem:[%s188 + $0x4a8] sm:$0xff]
        %v351 = vld [vmem:[%s188 + $0x4b0] sm:$0xff]
        %v352 = vld [vmem:[%s188 + $0x4b8] sm:$0xff]
        %v353 = vld [vmem:[%s188 + $0x4c0] sm:$0xff]
        %v354 = vld [vmem:[%s188 + $0x4c8] sm:$0xff]
        %v355 = vld [vmem:[%s188 + $0x4d0] sm:$0xff]
        %v356 = vld [vmem:[%s188 + $0x4d8] sm:$0xff]
        %v357 = vld [vmem:[%s188 + $0x4e0] sm:$0xff]
        %v358 = vld [vmem:[%s188 + $0x4e8] sm:$0xff]
        %v359 = vld [vmem:[%s188 + $0x4f0] sm:$0xff]
        %v360 = vld [vmem:[%s188 + $0x4f8] sm:$0xff]
        %v361 = vld [vmem:[%s188 + $0x500] sm:$0xff]
        %v362 = vld [vmem:[%s188 + $0x508] sm:$0xff]
        %v363 = vld [vmem:[%s188 + $0x510] sm:$0xff]
        %v364 = vld [vmem:[%s188 + $0x518] sm:$0xff]
        %v365 = vld [vmem:[%s188 + $0x520] sm:$0xff]
        %v366 = vld [vmem:[%s188 + $0x528] sm:$0xff]
        %v367 = vld [vmem:[%s188 + $0x530] sm:$0xff]
        %v368 = vld [vmem:[%s188 + $0x538] sm:$0xff]
        %v369 = vld [vmem:[%s188 + $0x540] sm:$0xff]
        %v370 = vld [vmem:[%s188 + $0x548] sm:$0xff]
        %v371 = vld [vmem:[%s188 + $0x550] sm:$0xff]
        %v372 = vld [vmem:[%s188 + $0x558] sm:$0xff]
        %v373 = vld [vmem:[%s188 + $0x560] sm:$0xff]
        %v374 = vld [vmem:[%s188 + $0x568] sm:$0xff]
        %v375 = vld [vmem:[%s188 + $0x570] sm:$0xff]
        %v376 = vld [vmem:[%s188 + $0x578] sm:$0xff]
        %v377 = vld [vmem:[%s188 + $0x580] sm:$0xff]
        %v378 = vld [vmem:[%s188 + $0x588] sm:$0xff]
        %v379 = vld [vmem:[%s188 + $0x590] sm:$0xff]
        %v380 = vld [vmem:[%s188 + $0x598] sm:$0xff]
        %v381 = vld [vmem:[%s188 + $0x5a0] sm:$0xff]
        %v382 = vld [vmem:[%s188 + $0x5a8] sm:$0xff]
        %v383 = vld [vmem:[%s188 + $0x5b0] sm:$0xff]
        %v384 = vld [vmem:[%s188 + $0x5b8] sm:$0xff]
        %v385 = vld [vmem:[%s188 + $0x5c0] sm:$0xff]
        %v386 = vld [vmem:[%s188 + $0x5c8] sm:$0xff]
        %v387 = vld [vmem:[%s188 + $0x5d0] sm:$0xff]
        %v388 = vld [vmem:[%s188 + $0x5d8] sm:$0xff]
        %v389 = vld [vmem:[%s188 + $0x5e0] sm:$0xff]
        %v390 = vld [vmem:[%s188 + $0x5e8] sm:$0xff]
        %v391 = vld [vmem:[%s188 + $0x5f0] sm:$0xff]
        %v392 = vld [vmem:[%s188 + $0x5f8] sm:$0xff]
        %v393 = vpack.c.bf16 %v297, %v201
        %v394 = vpack.c.bf16 %v298, %v202
        %v395 = vpack.c.bf16 %v299, %v203
        %v396 = vpack.c.bf16 %v300, %v204
        %v397 = vpack.c.bf16 %v301, %v205
        %v398 = vpack.c.bf16 %v302, %v206
        %v399 = vpack.c.bf16 %v303, %v207
        %v400 = vpack.c.bf16 %v304, %v208
        %v401 = vpack.c.bf16 %v305, %v209
        %v402 = vpack.c.bf16 %v306, %v210
        %v403 = vpack.c.bf16 %v307, %v211
        %v404 = vpack.c.bf16 %v308, %v212
        %v405 = vpack.c.bf16 %v309, %v213
        %v406 = vpack.c.bf16 %v310, %v214
        %v407 = vpack.c.bf16 %v311, %v215
        %v408 = vpack.c.bf16 %v312, %v216
        %v409 = vpack.c.bf16 %v313, %v217
        %v410 = vpack.c.bf16 %v314, %v218
        %v411 = vpack.c.bf16 %v315, %v219
        %v412 = vpack.c.bf16 %v316, %v220
        %v413 = vpack.c.bf16 %v317, %v221
        %v414 = vpack.c.bf16 %v318, %v222
        %v415 = vpack.c.bf16 %v319, %v223
        %v416 = vpack.c.bf16 %v320, %v224
        %v417 = vpack.c.bf16 %v321, %v225
        %v418 = vpack.c.bf16 %v322, %v226
        %v419 = vpack.c.bf16 %v323, %v227
        %v420 = vpack.c.bf16 %v324, %v228
        %v421 = vpack.c.bf16 %v325, %v229
        %v422 = vpack.c.bf16 %v326, %v230
        %v423 = vpack.c.bf16 %v327, %v231
        %v424 = vpack.c.bf16 %v328, %v232
        %v425 = vpack.c.bf16 %v329, %v233
        %v426 = vpack.c.bf16 %v330, %v234
        %v427 = vpack.c.bf16 %v331, %v235
        %v428 = vpack.c.bf16 %v332, %v236
        %v429 = vpack.c.bf16 %v333, %v237
        %v430 = vpack.c.bf16 %v334, %v238
        %v431 = vpack.c.bf16 %v335, %v239
        %v432 = vpack.c.bf16 %v336, %v240
        %v433 = vpack.c.bf16 %v337, %v241
        %v434 = vpack.c.bf16 %v338, %v242
        %v435 = vpack.c.bf16 %v339, %v243
        %v436 = vpack.c.bf16 %v340, %v244
        %v437 = vpack.c.bf16 %v341, %v245
        %v438 = vpack.c.bf16 %v342, %v246
        %v439 = vpack.c.bf16 %v343, %v247
        %v440 = vpack.c.bf16 %v344, %v248
        %v441 = vpack.c.bf16 %v345, %v249
        %v442 = vpack.c.bf16 %v346, %v250
        %v443 = vpack.c.bf16 %v347, %v251
        %v444 = vpack.c.bf16 %v348, %v252
        %v445 = vpack.c.bf16 %v349, %v253
        %v446 = vpack.c.bf16 %v350, %v254
        %v447 = vpack.c.bf16 %v351, %v255
        %v448 = vpack.c.bf16 %v352, %v256
        %v449 = vpack.c.bf16 %v353, %v257
        %v450 = vpack.c.bf16 %v354, %v258
        %v451 = vpack.c.bf16 %v355, %v259
        %v452 = vpack.c.bf16 %v356, %v260
        %v453 = vpack.c.bf16 %v357, %v261
        %v454 = vpack.c.bf16 %v358, %v262
        %v455 = vpack.c.bf16 %v359, %v263
        %v456 = vpack.c.bf16 %v360, %v264
        %v457 = vpack.c.bf16 %v361, %v265
        %v458 = vpack.c.bf16 %v362, %v266
        %v459 = vpack.c.bf16 %v363, %v267
        %v460 = vpack.c.bf16 %v364, %v268
        %v461 = vpack.c.bf16 %v365, %v269
        %v462 = vpack.c.bf16 %v366, %v270
        %v463 = vpack.c.bf16 %v367, %v271
        %v464 = vpack.c.bf16 %v368, %v272
        %v465 = vpack.c.bf16 %v369, %v273
        %v466 = vpack.c.bf16 %v370, %v274
        %v467 = vpack.c.bf16 %v371, %v275
        %v468 = vpack.c.bf16 %v372, %v276
        %v469 = vpack.c.bf16 %v373, %v277
        %v470 = vpack.c.bf16 %v374, %v278
        %v471 = vpack.c.bf16 %v375, %v279
        %v472 = vpack.c.bf16 %v376, %v280
        %v473 = vpack.c.bf16 %v377, %v281
        %v474 = vpack.c.bf16 %v378, %v282
        %v475 = vpack.c.bf16 %v379, %v283
        %v476 = vpack.c.bf16 %v380, %v284
        %v477 = vpack.c.bf16 %v381, %v285
        %v478 = vpack.c.bf16 %v382, %v286
        %v479 = vpack.c.bf16 %v383, %v287
        %v480 = vpack.c.bf16 %v384, %v288
        %v481 = vpack.c.bf16 %v385, %v289
        %v482 = vpack.c.bf16 %v386, %v290
        %v483 = vpack.c.bf16 %v387, %v291
        %v484 = vpack.c.bf16 %v388, %v292
        %v485 = vpack.c.bf16 %v389, %v293
        %v486 = vpack.c.bf16 %v390, %v294
        %v487 = vpack.c.bf16 %v391, %v295
        %v488 = vpack.c.bf16 %v392, %v296
        %v489 = vld [vmem:[%s1] sm:$0x3f]
        %v490 = vld [vmem:[%s1 + $0x8] sm:$0x3f]
        %v491 = vld [vmem:[%s1 + $0x10] sm:$0x3f]
        %v492 = vld [vmem:[%s1 + $0x18] sm:$0x3f]
        %v493 = vld [vmem:[%s1 + $0x20] sm:$0x3f]
        %v494 = vld [vmem:[%s1 + $0x28] sm:$0x3f]
        %v495 = vld [vmem:[%s1 + $0x30] sm:$0x3f]
        %v496 = vld [vmem:[%s1 + $0x38] sm:$0x3f]
        %v497 = vld [vmem:[%s1 + $0x40] sm:$0x3f]
        %v498 = vld [vmem:[%s1 + $0x48] sm:$0x3f]
        %v499 = vld [vmem:[%s1 + $0x50] sm:$0x3f]
        %v500 = vld [vmem:[%s1 + $0x58] sm:$0x3f]
        %v501 = vld [vmem:[%s1 + $0x60] sm:$0x3f]
        %v502 = vld [vmem:[%s1 + $0x68] sm:$0x3f]
        %v503 = vld [vmem:[%s1 + $0x70] sm:$0x3f]
        %v504 = vld [vmem:[%s1 + $0x78] sm:$0x3f]
        %v505 = vld [vmem:[%s1 + $0x80] sm:$0x3f]
        %v506 = vld [vmem:[%s1 + $0x88] sm:$0x3f]
        %v507 = vld [vmem:[%s1 + $0x90] sm:$0x3f]
        %v508 = vld [vmem:[%s1 + $0x98] sm:$0x3f]
        %v509 = vld [vmem:[%s1 + $0xa0] sm:$0x3f]
        %v510 = vld [vmem:[%s1 + $0xa8] sm:$0x3f]
        %v511 = vld [vmem:[%s1 + $0xb0] sm:$0x3f]
        %v512 = vld [vmem:[%s1 + $0xb8] sm:$0x3f]
        %v513 = vld [vmem:[%s1 + $0xc0] sm:$0x3f]
        %v514 = vld [vmem:[%s1 + $0xc8] sm:$0x3f]
        %v515 = vld [vmem:[%s1 + $0xd0] sm:$0x3f]
        %v516 = vld [vmem:[%s1 + $0xd8] sm:$0x3f]
        %v517 = vld [vmem:[%s1 + $0xe0] sm:$0x3f]
        %v518 = vld [vmem:[%s1 + $0xe8] sm:$0x3f]
        %v519 = vld [vmem:[%s1 + $0xf0] sm:$0x3f]
        %v520 = vld [vmem:[%s1 + $0xf8] sm:$0x3f]
        %v521 = vld [vmem:[%s1 + $0x100] sm:$0x3f]
        %v522 = vld [vmem:[%s1 + $0x108] sm:$0x3f]
        %v523 = vld [vmem:[%s1 + $0x110] sm:$0x3f]
        %v524 = vld [vmem:[%s1 + $0x118] sm:$0x3f]
        %v525 = vld [vmem:[%s1 + $0x120] sm:$0x3f]
        %v526 = vld [vmem:[%s1 + $0x128] sm:$0x3f]
        %v527 = vld [vmem:[%s1 + $0x130] sm:$0x3f]
        %v528 = vld [vmem:[%s1 + $0x138] sm:$0x3f]
        %v529 = vld [vmem:[%s1 + $0x140] sm:$0x3f]
        %v530 = vld [vmem:[%s1 + $0x148] sm:$0x3f]
        %v531 = vld [vmem:[%s1 + $0x150] sm:$0x3f]
        %v532 = vld [vmem:[%s1 + $0x158] sm:$0x3f]
        %v533 = vld [vmem:[%s1 + $0x160] sm:$0x3f]
        %v534 = vld [vmem:[%s1 + $0x168] sm:$0x3f]
        %v535 = vld [vmem:[%s1 + $0x170] sm:$0x3f]
        %v536 = vld [vmem:[%s1 + $0x178] sm:$0x3f]
        %v537 = vld [vmem:[%s1 + $0x180] sm:$0x3f]
        %v538 = vld [vmem:[%s1 + $0x188] sm:$0x3f]
        %v539 = vld [vmem:[%s1 + $0x190] sm:$0x3f]
        %v540 = vld [vmem:[%s1 + $0x198] sm:$0x3f]
        %v541 = vld [vmem:[%s1 + $0x1a0] sm:$0x3f]
        %v542 = vld [vmem:[%s1 + $0x1a8] sm:$0x3f]
        %v543 = vld [vmem:[%s1 + $0x1b0] sm:$0x3f]
        %v544 = vld [vmem:[%s1 + $0x1b8] sm:$0x3f]
        %v545 = vld [vmem:[%s1 + $0x1c0] sm:$0x3f]
        %v546 = vld [vmem:[%s1 + $0x1c8] sm:$0x3f]
        %v547 = vld [vmem:[%s1 + $0x1d0] sm:$0x3f]
        %v548 = vld [vmem:[%s1 + $0x1d8] sm:$0x3f]
        %v549 = vld [vmem:[%s1 + $0x1e0] sm:$0x3f]
        %v550 = vld [vmem:[%s1 + $0x1e8] sm:$0x3f]
        %v551 = vld [vmem:[%s1 + $0x1f0] sm:$0x3f]
        %v552 = vld [vmem:[%s1 + $0x1f8] sm:$0x3f]
        %v553 = vld [vmem:[%s1 + $0x200] sm:$0x3f]
        %v554 = vld [vmem:[%s1 + $0x208] sm:$0x3f]
        %v555 = vld [vmem:[%s1 + $0x210] sm:$0x3f]
        %v556 = vld [vmem:[%s1 + $0x218] sm:$0x3f]
        %v557 = vld [vmem:[%s1 + $0x220] sm:$0x3f]
        %v558 = vld [vmem:[%s1 + $0x228] sm:$0x3f]
        %v559 = vld [vmem:[%s1 + $0x230] sm:$0x3f]
        %v560 = vld [vmem:[%s1 + $0x238] sm:$0x3f]
        %v561 = vld [vmem:[%s1 + $0x240] sm:$0x3f]
        %v562 = vld [vmem:[%s1 + $0x248] sm:$0x3f]
        %v563 = vld [vmem:[%s1 + $0x250] sm:$0x3f]
        %v564 = vld [vmem:[%s1 + $0x258] sm:$0x3f]
        %v565 = vld [vmem:[%s1 + $0x260] sm:$0x3f]
        %v566 = vld [vmem:[%s1 + $0x268] sm:$0x3f]
        %v567 = vld [vmem:[%s1 + $0x270] sm:$0x3f]
        %v568 = vld [vmem:[%s1 + $0x278] sm:$0x3f]
        %v569 = vld [vmem:[%s1 + $0x280] sm:$0x3f]
        %v570 = vld [vmem:[%s1 + $0x288] sm:$0x3f]
        %v571 = vld [vmem:[%s1 + $0x290] sm:$0x3f]
        %v572 = vld [vmem:[%s1 + $0x298] sm:$0x3f]
        %v573 = vld [vmem:[%s1 + $0x2a0] sm:$0x3f]
        %v574 = vld [vmem:[%s1 + $0x2a8] sm:$0x3f]
        %v575 = vld [vmem:[%s1 + $0x2b0] sm:$0x3f]
        %v576 = vld [vmem:[%s1 + $0x2b8] sm:$0x3f]
        %v577 = vld [vmem:[%s1 + $0x2c0] sm:$0x3f]
        %v578 = vld [vmem:[%s1 + $0x2c8] sm:$0x3f]
        %v579 = vld [vmem:[%s1 + $0x2d0] sm:$0x3f]
        %v580 = vld [vmem:[%s1 + $0x2d8] sm:$0x3f]
        %v581 = vld [vmem:[%s1 + $0x2e0] sm:$0x3f]
        %v582 = vld [vmem:[%s1 + $0x2e8] sm:$0x3f]
        %v583 = vld [vmem:[%s1 + $0x2f0] sm:$0x3f]
        %v584 = vld [vmem:[%s1 + $0x2f8] sm:$0x3f]
        %v585 = vpack.c.bf16 %v489, %v489
        %v586 = vpack.c.bf16 %v490, %v490
        %v587 = vpack.c.bf16 %v491, %v491
        %v588 = vpack.c.bf16 %v492, %v492
        %v589 = vpack.c.bf16 %v493, %v493
        %v590 = vpack.c.bf16 %v494, %v494
        %v591 = vpack.c.bf16 %v495, %v495
        %v592 = vpack.c.bf16 %v496, %v496
        %v593 = vpack.c.bf16 %v497, %v497
        %v594 = vpack.c.bf16 %v498, %v498
        %v595 = vpack.c.bf16 %v499, %v499
        %v596 = vpack.c.bf16 %v500, %v500
        %v597 = vpack.c.bf16 %v501, %v501
        %v598 = vpack.c.bf16 %v502, %v502
        %v599 = vpack.c.bf16 %v503, %v503
        %v600 = vpack.c.bf16 %v504, %v504
        %v601 = vpack.c.bf16 %v505, %v505
        %v602 = vpack.c.bf16 %v506, %v506
        %v603 = vpack.c.bf16 %v507, %v507
        %v604 = vpack.c.bf16 %v508, %v508
        %v605 = vpack.c.bf16 %v509, %v509
        %v606 = vpack.c.bf16 %v510, %v510
        %v607 = vpack.c.bf16 %v511, %v511
        %v608 = vpack.c.bf16 %v512, %v512
        %v609 = vpack.c.bf16 %v513, %v513
        %v610 = vpack.c.bf16 %v514, %v514
        %v611 = vpack.c.bf16 %v515, %v515
        %v612 = vpack.c.bf16 %v516, %v516
        %v613 = vpack.c.bf16 %v517, %v517
        %v614 = vpack.c.bf16 %v518, %v518
        %v615 = vpack.c.bf16 %v519, %v519
        %v616 = vpack.c.bf16 %v520, %v520
        %v617 = vpack.c.bf16 %v521, %v521
        %v618 = vpack.c.bf16 %v522, %v522
        %v619 = vpack.c.bf16 %v523, %v523
        %v620 = vpack.c.bf16 %v524, %v524
        %v621 = vpack.c.bf16 %v525, %v525
        %v622 = vpack.c.bf16 %v526, %v526
        %v623 = vpack.c.bf16 %v527, %v527
        %v624 = vpack.c.bf16 %v528, %v528
        %v625 = vpack.c.bf16 %v529, %v529
        %v626 = vpack.c.bf16 %v530, %v530
        %v627 = vpack.c.bf16 %v531, %v531
        %v628 = vpack.c.bf16 %v532, %v532
        %v629 = vpack.c.bf16 %v533, %v533
        %v630 = vpack.c.bf16 %v534, %v534
        %v631 = vpack.c.bf16 %v535, %v535
        %v632 = vpack.c.bf16 %v536, %v536
        %v633 = vpack.c.bf16 %v537, %v537
        %v634 = vpack.c.bf16 %v538, %v538
        %v635 = vpack.c.bf16 %v539, %v539
        %v636 = vpack.c.bf16 %v540, %v540
        %v637 = vpack.c.bf16 %v541, %v541
        %v638 = vpack.c.bf16 %v542, %v542
        %v639 = vpack.c.bf16 %v543, %v543
        %v640 = vpack.c.bf16 %v544, %v544
        %v641 = vpack.c.bf16 %v545, %v545
        %v642 = vpack.c.bf16 %v546, %v546
        %v643 = vpack.c.bf16 %v547, %v547
        %v644 = vpack.c.bf16 %v548, %v548
        %v645 = vpack.c.bf16 %v549, %v549
        %v646 = vpack.c.bf16 %v550, %v550
        %v647 = vpack.c.bf16 %v551, %v551
        %v648 = vpack.c.bf16 %v552, %v552
        %v649 = vpack.c.bf16 %v553, %v553
        %v650 = vpack.c.bf16 %v554, %v554
        %v651 = vpack.c.bf16 %v555, %v555
        %v652 = vpack.c.bf16 %v556, %v556
        %v653 = vpack.c.bf16 %v557, %v557
        %v654 = vpack.c.bf16 %v558, %v558
        %v655 = vpack.c.bf16 %v559, %v559
        %v656 = vpack.c.bf16 %v560, %v560
        %v657 = vpack.c.bf16 %v561, %v561
        %v658 = vpack.c.bf16 %v562, %v562
        %v659 = vpack.c.bf16 %v563, %v563
        %v660 = vpack.c.bf16 %v564, %v564
        %v661 = vpack.c.bf16 %v565, %v565
        %v662 = vpack.c.bf16 %v566, %v566
        %v663 = vpack.c.bf16 %v567, %v567
        %v664 = vpack.c.bf16 %v568, %v568
        %v665 = vpack.c.bf16 %v569, %v569
        %v666 = vpack.c.bf16 %v570, %v570
        %v667 = vpack.c.bf16 %v571, %v571
        %v668 = vpack.c.bf16 %v572, %v572
        %v669 = vpack.c.bf16 %v573, %v573
        %v670 = vpack.c.bf16 %v574, %v574
        %v671 = vpack.c.bf16 %v575, %v575
        %v672 = vpack.c.bf16 %v576, %v576
        %v673 = vpack.c.bf16 %v577, %v577
        %v674 = vpack.c.bf16 %v578, %v578
        %v675 = vpack.c.bf16 %v579, %v579
        %v676 = vpack.c.bf16 %v580, %v580
        %v677 = vpack.c.bf16 %v581, %v581
        %v678 = vpack.c.bf16 %v582, %v582
        %v679 = vpack.c.bf16 %v583, %v583
        %v680 = vpack.c.bf16 %v584, %v584
        %v681 = vld [vmem:[%s2] sm:$0x1]
        %v683 = vlaneseq
        %v684 = vshrl.u32 %v683, 7
        %v685 = vsub.s32 0, %v684
        %v686 = vrot.slane %v681, %v685
        %688 = vmatprep.subr.bf16.mxu0 0
        %689 = vmatpush1.bf16.xpose.msra.mxu0 0
        %690 = vmatprep.subr.bf16.mxu0 0
        %691 = vmatpush1.bf16.xpose.msra.mxu0 0
        %692 = vmatprep.subr.bf16.mxu0 0
        %693 = vmatpush1.bf16.xpose.msra.mxu0 0
        %694 = vmatprep.subr.bf16.mxu0 0
        %695 = vmatpush1.bf16.xpose.msra.mxu0 0
        %696 = vmatprep.subr.bf16.mxu0 0
        %697 = vmatpush1.bf16.xpose.msra.mxu0 0
        %698 = vmatprep.subr.bf16.mxu0 0
        %699 = vmatpush1.bf16.xpose.msra.mxu0 0
        %700 = vmatprep.subr.bf16.mxu0 0
        %701 = vmatpush1.bf16.xpose.msra.mxu0 0
        %702 = vmatprep.subr.bf16.mxu0 %v586
        %703 = vmatpush1.bf16.xpose.msra.mxu0 %v585
        %704 = vmatprep.subr.bf16.mxu0 0
        %705 = vmatpush2.bf16.xpose.msra.mxu0 0
        %706 = vmatprep.subr.bf16.mxu0 0
        %707 = vmatpush2.bf16.xpose.msra.mxu0 0
        %708 = vmatprep.subr.bf16.mxu0 0
        %709 = vmatpush2.bf16.xpose.msra.mxu0 0
        %710 = vmatprep.subr.bf16.mxu0 0
        %711 = vmatpush2.bf16.xpose.msra.mxu0 0
        %712 = vmatprep.subr.bf16.mxu0 0
        %713 = vmatpush2.bf16.xpose.msra.mxu0 0
        %714 = vmatprep.subr.bf16.mxu0 0
        %715 = vmatpush2.bf16.xpose.msra.mxu0 0
        %716 = vmatprep.subr.bf16.mxu0 0
        %717 = vmatpush2.bf16.xpose.msra.mxu0 0
        %718 = vmatprep.subr.bf16.mxu0 0
        %719 = vmatpush2.bf16.xpose.msra.mxu0 0
        %720 = vmatprep.mubr.bf16.mxu0 %v394
        %721 = vmatmul.mubr.bf16.gmra.mxu0 %v393
        %v722 = vpop.f32.mrf.mxu0
        %v723 = vadd.f32 %v686, %v722
        %v724 = vpop.f32.mrf.mxu0
        %v725 = vpop.f32.mrf.mxu0
        %v726 = vadd.f32 %v686, %v725
        %v727 = vpop.f32.mrf.mxu0
        %728 = vdwg.mxu0
        %729 = vmatprep.subr.bf16.mxu0 0
        %730 = vmatpush1.bf16.xpose.msra.mxu0 0
        %731 = vmatprep.subr.bf16.mxu0 0
        %732 = vmatpush1.bf16.xpose.msra.mxu0 0
        %733 = vmatprep.subr.bf16.mxu0 0
        %734 = vmatpush1.bf16.xpose.msra.mxu0 0
        %735 = vmatprep.subr.bf16.mxu0 0
        %736 = vmatpush1.bf16.xpose.msra.mxu0 0
        %737 = vmatprep.subr.bf16.mxu0 0
        %738 = vmatpush1.bf16.xpose.msra.mxu0 0
        %739 = vmatprep.subr.bf16.mxu0 0
        %740 = vmatpush1.bf16.xpose.msra.mxu0 0
        %741 = vmatprep.subr.bf16.mxu0 0
        %742 = vmatpush1.bf16.xpose.msra.mxu0 0
        %743 = vmatprep.subr.bf16.mxu0 %v588
        %744 = vmatpush1.bf16.xpose.msra.mxu0 %v587
        %745 = vmatprep.subr.bf16.mxu0 0
        %746 = vmatpush2.bf16.xpose.msra.mxu0 0
        %747 = vmatprep.subr.bf16.mxu0 0
        %748 = vmatpush2.bf16.xpose.msra.mxu0 0
        %749 = vmatprep.subr.bf16.mxu0 0
        %750 = vmatpush2.bf16.xpose.msra.mxu0 0
        %751 = vmatprep.subr.bf16.mxu0 0
        %752 = vmatpush2.bf16.xpose.msra.mxu0 0
        %753 = vmatprep.subr.bf16.mxu0 0
        %754 = vmatpush2.bf16.xpose.msra.mxu0 0
        %755 = vmatprep.subr.bf16.mxu0 0
        %756 = vmatpush2.bf16.xpose.msra.mxu0 0
        %757 = vmatprep.subr.bf16.mxu0 0
        %758 = vmatpush2.bf16.xpose.msra.mxu0 0
        %759 = vmatprep.subr.bf16.mxu0 0
        %760 = vmatpush2.bf16.xpose.msra.mxu0 0
        %761 = vmatprep.mubr.bf16.mxu0 %v396
        %762 = vmatmul.mubr.bf16.gmra.mxu0 %v395
        %v763 = vpop.f32.mrf.mxu0
        %v764 = vadd.f32 %v723, %v763
        %v765 = vpop.f32.mrf.mxu0
        %v766 = vpop.f32.mrf.mxu0
        %v767 = vadd.f32 %v726, %v766
        %v768 = vpop.f32.mrf.mxu0
        %769 = vdwg.mxu0
        %770 = vmatprep.subr.bf16.mxu0 0
        %771 = vmatpush1.bf16.xpose.msra.mxu0 0
        %772 = vmatprep.subr.bf16.mxu0 0
        %773 = vmatpush1.bf16.xpose.msra.mxu0 0
        %774 = vmatprep.subr.bf16.mxu0 0
        %775 = vmatpush1.bf16.xpose.msra.mxu0 0
        %776 = vmatprep.subr.bf16.mxu0 0
        %777 = vmatpush1.bf16.xpose.msra.mxu0 0
        %778 = vmatprep.subr.bf16.mxu0 0
        %779 = vmatpush1.bf16.xpose.msra.mxu0 0
        %780 = vmatprep.subr.bf16.mxu0 0
        %781 = vmatpush1.bf16.xpose.msra.mxu0 0
        %782 = vmatprep.subr.bf16.mxu0 0
        %783 = vmatpush1.bf16.xpose.msra.mxu0 0
        %784 = vmatprep.subr.bf16.mxu0 %v590
        %785 = vmatpush1.bf16.xpose.msra.mxu0 %v589
        %786 = vmatprep.subr.bf16.mxu0 0
        %787 = vmatpush2.bf16.xpose.msra.mxu0 0
        %788 = vmatprep.subr.bf16.mxu0 0
        %789 = vmatpush2.bf16.xpose.msra.mxu0 0
        %790 = vmatprep.subr.bf16.mxu0 0
        %791 = vmatpush2.bf16.xpose.msra.mxu0 0
        %792 = vmatprep.subr.bf16.mxu0 0
        %793 = vmatpush2.bf16.xpose.msra.mxu0 0
        %794 = vmatprep.subr.bf16.mxu0 0
        %795 = vmatpush2.bf16.xpose.msra.mxu0 0
        %796 = vmatprep.subr.bf16.mxu0 0
        %797 = vmatpush2.bf16.xpose.msra.mxu0 0
        %798 = vmatprep.subr.bf16.mxu0 0
        %799 = vmatpush2.bf16.xpose.msra.mxu0 0
        %800 = vmatprep.subr.bf16.mxu0 0
        %801 = vmatpush2.bf16.xpose.msra.mxu0 0
        %802 = vmatprep.mubr.bf16.mxu0 %v398
        %803 = vmatmul.mubr.bf16.gmra.mxu0 %v397
        %v804 = vpop.f32.mrf.mxu0
        %v805 = vadd.f32 %v764, %v804
        %v806 = vpop.f32.mrf.mxu0
        %v807 = vpop.f32.mrf.mxu0
        %v808 = vadd.f32 %v767, %v807
        %v809 = vpop.f32.mrf.mxu0
        %810 = vdwg.mxu0
        %811 = vmatprep.subr.bf16.mxu0 0
        %812 = vmatpush1.bf16.xpose.msra.mxu0 0
        %813 = vmatprep.subr.bf16.mxu0 0
        %814 = vmatpush1.bf16.xpose.msra.mxu0 0
        %815 = vmatprep.subr.bf16.mxu0 0
        %816 = vmatpush1.bf16.xpose.msra.mxu0 0
        %817 = vmatprep.subr.bf16.mxu0 0
        %818 = vmatpush1.bf16.xpose.msra.mxu0 0
        %819 = vmatprep.subr.bf16.mxu0 0
        %820 = vmatpush1.bf16.xpose.msra.mxu0 0
        %821 = vmatprep.subr.bf16.mxu0 0
        %822 = vmatpush1.bf16.xpose.msra.mxu0 0
        %823 = vmatprep.subr.bf16.mxu0 0
        %824 = vmatpush1.bf16.xpose.msra.mxu0 0
        %825 = vmatprep.subr.bf16.mxu0 %v592
        %826 = vmatpush1.bf16.xpose.msra.mxu0 %v591
        %827 = vmatprep.subr.bf16.mxu0 0
        %828 = vmatpush2.bf16.xpose.msra.mxu0 0
        %829 = vmatprep.subr.bf16.mxu0 0
        %830 = vmatpush2.bf16.xpose.msra.mxu0 0
        %831 = vmatprep.subr.bf16.mxu0 0
        %832 = vmatpush2.bf16.xpose.msra.mxu0 0
        %833 = vmatprep.subr.bf16.mxu0 0
        %834 = vmatpush2.bf16.xpose.msra.mxu0 0
        %835 = vmatprep.subr.bf16.mxu0 0
        %836 = vmatpush2.bf16.xpose.msra.mxu0 0
        %837 = vmatprep.subr.bf16.mxu0 0
        %838 = vmatpush2.bf16.xpose.msra.mxu0 0
        %839 = vmatprep.subr.bf16.mxu0 0
        %840 = vmatpush2.bf16.xpose.msra.mxu0 0
        %841 = vmatprep.subr.bf16.mxu0 0
        %842 = vmatpush2.bf16.xpose.msra.mxu0 0
        %843 = vmatprep.mubr.bf16.mxu0 %v400
        %844 = vmatmul.mubr.bf16.gmra.mxu0 %v399
        %v845 = vpop.f32.mrf.mxu0
        %v846 = vadd.f32 %v805, %v845
        %v847 = vpop.f32.mrf.mxu0
        %v848 = vpop.f32.mrf.mxu0
        %v849 = vadd.f32 %v808, %v848
        %v850 = vpop.f32.mrf.mxu0
        %851 = vdwg.mxu0
        %852 = vmatprep.subr.bf16.mxu0 0
        %853 = vmatpush1.bf16.xpose.msra.mxu0 0
        %854 = vmatprep.subr.bf16.mxu0 0
        %855 = vmatpush1.bf16.xpose.msra.mxu0 0
        %856 = vmatprep.subr.bf16.mxu0 0
        %857 = vmatpush1.bf16.xpose.msra.mxu0 0
        %858 = vmatprep.subr.bf16.mxu0 0
        %859 = vmatpush1.bf16.xpose.msra.mxu0 0
        %860 = vmatprep.subr.bf16.mxu0 0
        %861 = vmatpush1.bf16.xpose.msra.mxu0 0
        %862 = vmatprep.subr.bf16.mxu0 0
        %863 = vmatpush1.bf16.xpose.msra.mxu0 0
        %864 = vmatprep.subr.bf16.mxu0 0
        %865 = vmatpush1.bf16.xpose.msra.mxu0 0
        %866 = vmatprep.subr.bf16.mxu0 %v594
        %867 = vmatpush1.bf16.xpose.msra.mxu0 %v593
        %868 = vmatprep.subr.bf16.mxu0 0
        %869 = vmatpush2.bf16.xpose.msra.mxu0 0
        %870 = vmatprep.subr.bf16.mxu0 0
        %871 = vmatpush2.bf16.xpose.msra.mxu0 0
        %872 = vmatprep.subr.bf16.mxu0 0
        %873 = vmatpush2.bf16.xpose.msra.mxu0 0
        %874 = vmatprep.subr.bf16.mxu0 0
        %875 = vmatpush2.bf16.xpose.msra.mxu0 0
        %876 = vmatprep.subr.bf16.mxu0 0
        %877 = vmatpush2.bf16.xpose.msra.mxu0 0
        %878 = vmatprep.subr.bf16.mxu0 0
        %879 = vmatpush2.bf16.xpose.msra.mxu0 0
        %880 = vmatprep.subr.bf16.mxu0 0
        %881 = vmatpush2.bf16.xpose.msra.mxu0 0
        %882 = vmatprep.subr.bf16.mxu0 0
        %883 = vmatpush2.bf16.xpose.msra.mxu0 0
        %884 = vmatprep.mubr.bf16.mxu0 %v402
        %885 = vmatmul.mubr.bf16.gmra.mxu0 %v401
        %v886 = vpop.f32.mrf.mxu0
        %v887 = vadd.f32 %v846, %v886
        %v888 = vpop.f32.mrf.mxu0
        %v889 = vpop.f32.mrf.mxu0
        %v890 = vadd.f32 %v849, %v889
        %v891 = vpop.f32.mrf.mxu0
        %892 = vdwg.mxu0
        %893 = vmatprep.subr.bf16.mxu0 0
        %894 = vmatpush1.bf16.xpose.msra.mxu0 0
        %895 = vmatprep.subr.bf16.mxu0 0
        %896 = vmatpush1.bf16.xpose.msra.mxu0 0
        %897 = vmatprep.subr.bf16.mxu0 0
        %898 = vmatpush1.bf16.xpose.msra.mxu0 0
        %899 = vmatprep.subr.bf16.mxu0 0
        %900 = vmatpush1.bf16.xpose.msra.mxu0 0
        %901 = vmatprep.subr.bf16.mxu0 0
        %902 = vmatpush1.bf16.xpose.msra.mxu0 0
        %903 = vmatprep.subr.bf16.mxu0 0
        %904 = vmatpush1.bf16.xpose.msra.mxu0 0
        %905 = vmatprep.subr.bf16.mxu0 0
        %906 = vmatpush1.bf16.xpose.msra.mxu0 0
        %907 = vmatprep.subr.bf16.mxu0 %v596
        %908 = vmatpush1.bf16.xpose.msra.mxu0 %v595
        %909 = vmatprep.subr.bf16.mxu0 0
        %910 = vmatpush2.bf16.xpose.msra.mxu0 0
        %911 = vmatprep.subr.bf16.mxu0 0
        %912 = vmatpush2.bf16.xpose.msra.mxu0 0
        %913 = vmatprep.subr.bf16.mxu0 0
        %914 = vmatpush2.bf16.xpose.msra.mxu0 0
        %915 = vmatprep.subr.bf16.mxu0 0
        %916 = vmatpush2.bf16.xpose.msra.mxu0 0
        %917 = vmatprep.subr.bf16.mxu0 0
        %918 = vmatpush2.bf16.xpose.msra.mxu0 0
        %919 = vmatprep.subr.bf16.mxu0 0
        %920 = vmatpush2.bf16.xpose.msra.mxu0 0
        %921 = vmatprep.subr.bf16.mxu0 0
        %922 = vmatpush2.bf16.xpose.msra.mxu0 0
        %923 = vmatprep.subr.bf16.mxu0 0
        %924 = vmatpush2.bf16.xpose.msra.mxu0 0
        %925 = vmatprep.mubr.bf16.mxu0 %v404
        %926 = vmatmul.mubr.bf16.gmra.mxu0 %v403
        %v927 = vpop.f32.mrf.mxu0
        %v928 = vadd.f32 %v887, %v927
        %v929 = vpop.f32.mrf.mxu0
        %v930 = vpop.f32.mrf.mxu0
        %v931 = vadd.f32 %v890, %v930
        %v932 = vpop.f32.mrf.mxu0
        %933 = vdwg.mxu0
        %934 = vmatprep.subr.bf16.mxu0 0
        %935 = vmatpush1.bf16.xpose.msra.mxu0 0
        %936 = vmatprep.subr.bf16.mxu0 0
        %937 = vmatpush1.bf16.xpose.msra.mxu0 0
        %938 = vmatprep.subr.bf16.mxu0 0
        %939 = vmatpush1.bf16.xpose.msra.mxu0 0
        %940 = vmatprep.subr.bf16.mxu0 0
        %941 = vmatpush1.bf16.xpose.msra.mxu0 0
        %942 = vmatprep.subr.bf16.mxu0 0
        %943 = vmatpush1.bf16.xpose.msra.mxu0 0
        %944 = vmatprep.subr.bf16.mxu0 0
        %945 = vmatpush1.bf16.xpose.msra.mxu0 0
        %946 = vmatprep.subr.bf16.mxu0 0
        %947 = vmatpush1.bf16.xpose.msra.mxu0 0
        %948 = vmatprep.subr.bf16.mxu0 %v598
        %949 = vmatpush1.bf16.xpose.msra.mxu0 %v597
        %950 = vmatprep.subr.bf16.mxu0 0
        %951 = vmatpush2.bf16.xpose.msra.mxu0 0
        %952 = vmatprep.subr.bf16.mxu0 0
        %953 = vmatpush2.bf16.xpose.msra.mxu0 0
        %954 = vmatprep.subr.bf16.mxu0 0
        %955 = vmatpush2.bf16.xpose.msra.mxu0 0
        %956 = vmatprep.subr.bf16.mxu0 0
        %957 = vmatpush2.bf16.xpose.msra.mxu0 0
        %958 = vmatprep.subr.bf16.mxu0 0
        %959 = vmatpush2.bf16.xpose.msra.mxu0 0
        %960 = vmatprep.subr.bf16.mxu0 0
        %961 = vmatpush2.bf16.xpose.msra.mxu0 0
        %962 = vmatprep.subr.bf16.mxu0 0
        %963 = vmatpush2.bf16.xpose.msra.mxu0 0
        %964 = vmatprep.subr.bf16.mxu0 0
        %965 = vmatpush2.bf16.xpose.msra.mxu0 0
        %966 = vmatprep.mubr.bf16.mxu0 %v406
        %967 = vmatmul.mubr.bf16.gmra.mxu0 %v405
        %v968 = vpop.f32.mrf.mxu0
        %v969 = vadd.f32 %v928, %v968
        %v970 = vpop.f32.mrf.mxu0
        %v971 = vpop.f32.mrf.mxu0
        %v972 = vadd.f32 %v931, %v971
        %v973 = vpop.f32.mrf.mxu0
        %974 = vdwg.mxu0
        %975 = vmatprep.subr.bf16.mxu0 0
        %976 = vmatpush1.bf16.xpose.msra.mxu0 0
        %977 = vmatprep.subr.bf16.mxu0 0
        %978 = vmatpush1.bf16.xpose.msra.mxu0 0
        %979 = vmatprep.subr.bf16.mxu0 0
        %980 = vmatpush1.bf16.xpose.msra.mxu0 0
        %981 = vmatprep.subr.bf16.mxu0 0
        %982 = vmatpush1.bf16.xpose.msra.mxu0 0
        %983 = vmatprep.subr.bf16.mxu0 0
        %984 = vmatpush1.bf16.xpose.msra.mxu0 0
        %985 = vmatprep.subr.bf16.mxu0 0
        %986 = vmatpush1.bf16.xpose.msra.mxu0 0
        %987 = vmatprep.subr.bf16.mxu0 0
        %988 = vmatpush1.bf16.xpose.msra.mxu0 0
        %989 = vmatprep.subr.bf16.mxu0 %v600
        %990 = vmatpush1.bf16.xpose.msra.mxu0 %v599
        %991 = vmatprep.subr.bf16.mxu0 0
        %992 = vmatpush2.bf16.xpose.msra.mxu0 0
        %993 = vmatprep.subr.bf16.mxu0 0
        %994 = vmatpush2.bf16.xpose.msra.mxu0 0
        %995 = vmatprep.subr.bf16.mxu0 0
        %996 = vmatpush2.bf16.xpose.msra.mxu0 0
        %997 = vmatprep.subr.bf16.mxu0 0
        %998 = vmatpush2.bf16.xpose.msra.mxu0 0
        %999 = vmatprep.subr.bf16.mxu0 0
        %1000 = vmatpush2.bf16.xpose.msra.mxu0 0
        %1001 = vmatprep.subr.bf16.mxu0 0
        %1002 = vmatpush2.bf16.xpose.msra.mxu0 0
        %1003 = vmatprep.subr.bf16.mxu0 0
        %1004 = vmatpush2.bf16.xpose.msra.mxu0 0
        %1005 = vmatprep.subr.bf16.mxu0 0
        %1006 = vmatpush2.bf16.xpose.msra.mxu0 0
        %1007 = vmatprep.mubr.bf16.mxu0 %v408
        %1008 = vmatmul.mubr.bf16.gmra.mxu0 %v407
        %v1009 = vpop.f32.mrf.mxu0
        %v1010 = vadd.f32 %v969, %v1009
        %v1011 = vpop.f32.mrf.mxu0
        %v1012 = vpop.f32.mrf.mxu0
        %v1013 = vadd.f32 %v972, %v1012
        %v1014 = vpop.f32.mrf.mxu0
        %1015 = vdwg.mxu0
        %1016 = vmatprep.subr.bf16.mxu0 0
        %1017 = vmatpush1.bf16.xpose.msra.mxu0 0
        %1018 = vmatprep.subr.bf16.mxu0 0
        %1019 = vmatpush1.bf16.xpose.msra.mxu0 0
        %1020 = vmatprep.subr.bf16.mxu0 0
        %1021 = vmatpush1.bf16.xpose.msra.mxu0 0
        %1022 = vmatprep.subr.bf16.mxu0 0
        %1023 = vmatpush1.bf16.xpose.msra.mxu0 0
        %1024 = vmatprep.subr.bf16.mxu0 0
        %1025 = vmatpush1.bf16.xpose.msra.mxu0 0
        %1026 = vmatprep.subr.bf16.mxu0 0
        %1027 = vmatpush1.bf16.xpose.msra.mxu0 0
        %1028 = vmatprep.subr.bf16.mxu0 0
        %1029 = vmatpush1.bf16.xpose.msra.mxu0 0
        %1030 = vmatprep.subr.bf16.mxu0 %v602
        %1031 = vmatpush1.bf16.xpose.msra.mxu0 %v601
        %1032 = vmatprep.subr.bf16.mxu0 0
        %1033 = vmatpush2.bf16.xpose.msra.mxu0 0
        %1034 = vmatprep.subr.bf16.mxu0 0
        %1035 = vmatpush2.bf16.xpose.msra.mxu0 0
        %1036 = vmatprep.subr.bf16.mxu0 0
        %1037 = vmatpush2.bf16.xpose.msra.mxu0 0
        %1038 = vmatprep.subr.bf16.mxu0 0
        %1039 = vmatpush2.bf16.xpose.msra.mxu0 0
        %1040 = vmatprep.subr.bf16.mxu0 0
        %1041 = vmatpush2.bf16.xpose.msra.mxu0 0
        %1042 = vmatprep.subr.bf16.mxu0 0
        %1043 = vmatpush2.bf16.xpose.msra.mxu0 0
        %1044 = vmatprep.subr.bf16.mxu0 0
        %1045 = vmatpush2.bf16.xpose.msra.mxu0 0
        %1046 = vmatprep.subr.bf16.mxu0 0
        %1047 = vmatpush2.bf16.xpose.msra.mxu0 0
        %1048 = vmatprep.mubr.bf16.mxu0 %v410
        %1049 = vmatmul.mubr.bf16.gmra.mxu0 %v409
        %v1050 = vpop.f32.mrf.mxu0
        %v1051 = vadd.f32 %v1010, %v1050
        %v1052 = vpop.f32.mrf.mxu0
        %v1053 = vpop.f32.mrf.mxu0
        %v1054 = vadd.f32 %v1013, %v1053
        %v1055 = vpop.f32.mrf.mxu0
        %1056 = vdwg.mxu0
        %1057 = vmatprep.subr.bf16.mxu0 0
        %1058 = vmatpush1.bf16.xpose.msra.mxu0 0
        %1059 = vmatprep.subr.bf16.mxu0 0
        %1060 = vmatpush1.bf16.xpose.msra.mxu0 0
        %1061 = vmatprep.subr.bf16.mxu0 0
        %1062 = vmatpush1.bf16.xpose.msra.mxu0 0
        %1063 = vmatprep.subr.bf16.mxu0 0
        %1064 = vmatpush1.bf16.xpose.msra.mxu0 0
        %1065 = vmatprep.subr.bf16.mxu0 0
        %1066 = vmatpush1.bf16.xpose.msra.mxu0 0
        %1067 = vmatprep.subr.bf16.mxu0 0
        %1068 = vmatpush1.bf16.xpose.msra.mxu0 0
        %1069 = vmatprep.subr.bf16.mxu0 0
        %1070 = vmatpush1.bf16.xpose.msra.mxu0 0
        %1071 = vmatprep.subr.bf16.mxu0 %v604
        %1072 = vmatpush1.bf16.xpose.msra.mxu0 %v603
        %1073 = vmatprep.subr.bf16.mxu0 0
        %1074 = vmatpush2.bf16.xpose.msra.mxu0 0
        %1075 = vmatprep.subr.bf16.mxu0 0
        %1076 = vmatpush2.bf16.xpose.msra.mxu0 0
        %1077 = vmatprep.subr.bf16.mxu0 0
        %1078 = vmatpush2.bf16.xpose.msra.mxu0 0
        %1079 = vmatprep.subr.bf16.mxu0 0
        %1080 = vmatpush2.bf16.xpose.msra.mxu0 0
        %1081 = vmatprep.subr.bf16.mxu0 0
        %1082 = vmatpush2.bf16.xpose.msra.mxu0 0
        %1083 = vmatprep.subr.bf16.mxu0 0
        %1084 = vmatpush2.bf16.xpose.msra.mxu0 0
        %1085 = vmatprep.subr.bf16.mxu0 0
        %1086 = vmatpush2.bf16.xpose.msra.mxu0 0
        %1087 = vmatprep.subr.bf16.mxu0 0
        %1088 = vmatpush2.bf16.xpose.msra.mxu0 0
        %1089 = vmatprep.mubr.bf16.mxu0 %v412
        %1090 = vmatmul.mubr.bf16.gmra.mxu0 %v411
        %v1091 = vpop.f32.mrf.mxu0
        %v1092 = vadd.f32 %v1051, %v1091
        %v1093 = vpop.f32.mrf.mxu0
        %v1094 = vpop.f32.mrf.mxu0
        %v1095 = vadd.f32 %v1054, %v1094
        %v1096 = vpop.f32.mrf.mxu0
        %1097 = vdwg.mxu0
        %1098 = vmatprep.subr.bf16.mxu0 0
        %1099 = vmatpush1.bf16.xpose.msra.mxu0 0
        %1100 = vmatprep.subr.bf16.mxu0 0
        %1101 = vmatpush1.bf16.xpose.msra.mxu0 0
        %1102 = vmatprep.subr.bf16.mxu0 0
        %1103 = vmatpush1.bf16.xpose.msra.mxu0 0
        %1104 = vmatprep.subr.bf16.mxu0 0
        %1105 = vmatpush1.bf16.xpose.msra.mxu0 0
        %1106 = vmatprep.subr.bf16.mxu0 0
        %1107 = vmatpush1.bf16.xpose.msra.mxu0 0
        %1108 = vmatprep.subr.bf16.mxu0 0
        %1109 = vmatpush1.bf16.xpose.msra.mxu0 0
        %1110 = vmatprep.subr.bf16.mxu0 0
        %1111 = vmatpush1.bf16.xpose.msra.mxu0 0
        %1112 = vmatprep.subr.bf16.mxu0 %v606
        %1113 = vmatpush1.bf16.xpose.msra.mxu0 %v605
        %1114 = vmatprep.subr.bf16.mxu0 0
        %1115 = vmatpush2.bf16.xpose.msra.mxu0 0
        %1116 = vmatprep.subr.bf16.mxu0 0
        %1117 = vmatpush2.bf16.xpose.msra.mxu0 0
        %1118 = vmatprep.subr.bf16.mxu0 0
        %1119 = vmatpush2.bf16.xpose.msra.mxu0 0
        %1120 = vmatprep.subr.bf16.mxu0 0
        %1121 = vmatpush2.bf16.xpose.msra.mxu0 0
        %1122 = vmatprep.subr.bf16.mxu0 0
        %1123 = vmatpush2.bf16.xpose.msra.mxu0 0
        %1124 = vmatprep.subr.bf16.mxu0 0
        %1125 = vmatpush2.bf16.xpose.msra.mxu0 0
        %1126 = vmatprep.subr.bf16.mxu0 0
        %1127 = vmatpush2.bf16.xpose.msra.mxu0 0
        %1128 = vmatprep.subr.bf16.mxu0 0
        %1129 = vmatpush2.bf16.xpose.msra.mxu0 0
        %1130 = vmatprep.mubr.bf16.mxu0 %v414
        %1131 = vmatmul.mubr.bf16.gmra.mxu0 %v413
        %v1132 = vpop.f32.mrf.mxu0
        %v1133 = vadd.f32 %v1092, %v1132
        %v1134 = vpop.f32.mrf.mxu0
        %v1135 = vpop.f32.mrf.mxu0
        %v1136 = vadd.f32 %v1095, %v1135
        %v1137 = vpop.f32.mrf.mxu0
        %1138 = vdwg.mxu0
        %1139 = vmatprep.subr.bf16.mxu0 0
        %1140 = vmatpush1.bf16.xpose.msra.mxu0 0
        %1141 = vmatprep.subr.bf16.mxu0 0
        %1142 = vmatpush1.bf16.xpose.msra.mxu0 0
        %1143 = vmatprep.subr.bf16.mxu0 0
        %1144 = vmatpush1.bf16.xpose.msra.mxu0 0
        %1145 = vmatprep.subr.bf16.mxu0 0
        %1146 = vmatpush1.bf16.xpose.msra.mxu0 0
        %1147 = vmatprep.subr.bf16.mxu0 0
        %1148 = vmatpush1.bf16.xpose.msra.mxu0 0
        %1149 = vmatprep.subr.bf16.mxu0 0
        %1150 = vmatpush1.bf16.xpose.msra.mxu0 0
        %1151 = vmatprep.subr.bf16.mxu0 0
        %1152 = vmatpush1.bf16.xpose.msra.mxu0 0
        %1153 = vmatprep.subr.bf16.mxu0 %v608
        %1154 = vmatpush1.bf16.xpose.msra.mxu0 %v607
        %1155 = vmatprep.subr.bf16.mxu0 0
        %1156 = vmatpush2.bf16.xpose.msra.mxu0 0
        %1157 = vmatprep.subr.bf16.mxu0 0
        %1158 = vmatpush2.bf16.xpose.msra.mxu0 0
        %1159 = vmatprep.subr.bf16.mxu0 0
        %1160 = vmatpush2.bf16.xpose.msra.mxu0 0
        %1161 = vmatprep.subr.bf16.mxu0 0
        %1162 = vmatpush2.bf16.xpose.msra.mxu0 0
        %1163 = vmatprep.subr.bf16.mxu0 0
        %1164 = vmatpush2.bf16.xpose.msra.mxu0 0
        %1165 = vmatprep.subr.bf16.mxu0 0
        %1166 = vmatpush2.bf16.xpose.msra.mxu0 0
        %1167 = vmatprep.subr.bf16.mxu0 0
        %1168 = vmatpush2.bf16.xpose.msra.mxu0 0
        %1169 = vmatprep.subr.bf16.mxu0 0
        %1170 = vmatpush2.bf16.xpose.msra.mxu0 0
        %1171 = vmatprep.mubr.bf16.mxu0 %v416
        %1172 = vmatmul.mubr.bf16.gmra.mxu0 %v415
        %v1173 = vpop.f32.mrf.mxu0
        %v1174 = vadd.f32 %v1133, %v1173
        %v1175 = vpop.f32.mrf.mxu0
        %v1176 = vpop.f32.mrf.mxu0
        %v1177 = vadd.f32 %v1136, %v1176
        %v1178 = vpop.f32.mrf.mxu0
        %1179 = vdwg.mxu0
        %1180 = vmatprep.subr.bf16.mxu0 0
        %1181 = vmatpush1.bf16.xpose.msra.mxu0 0
        %1182 = vmatprep.subr.bf16.mxu0 0
        %1183 = vmatpush1.bf16.xpose.msra.mxu0 0
        %1184 = vmatprep.subr.bf16.mxu0 0
        %1185 = vmatpush1.bf16.xpose.msra.mxu0 0
        %1186 = vmatprep.subr.bf16.mxu0 0
        %1187 = vmatpush1.bf16.xpose.msra.mxu0 0
        %1188 = vmatprep.subr.bf16.mxu0 0
        %1189 = vmatpush1.bf16.xpose.msra.mxu0 0
        %1190 = vmatprep.subr.bf16.mxu0 0
        %1191 = vmatpush1.bf16.xpose.msra.mxu0 0
        %1192 = vmatprep.subr.bf16.mxu0 0
        %1193 = vmatpush1.bf16.xpose.msra.mxu0 0
        %1194 = vmatprep.subr.bf16.mxu0 %v610
        %1195 = vmatpush1.bf16.xpose.msra.mxu0 %v609
        %1196 = vmatprep.subr.bf16.mxu0 0
        %1197 = vmatpush2.bf16.xpose.msra.mxu0 0
        %1198 = vmatprep.subr.bf16.mxu0 0
        %1199 = vmatpush2.bf16.xpose.msra.mxu0 0
        %1200 = vmatprep.subr.bf16.mxu0 0
        %1201 = vmatpush2.bf16.xpose.msra.mxu0 0
        %1202 = vmatprep.subr.bf16.mxu0 0
        %1203 = vmatpush2.bf16.xpose.msra.mxu0 0
        %1204 = vmatprep.subr.bf16.mxu0 0
        %1205 = vmatpush2.bf16.xpose.msra.mxu0 0
        %1206 = vmatprep.subr.bf16.mxu0 0
        %1207 = vmatpush2.bf16.xpose.msra.mxu0 0
        %1208 = vmatprep.subr.bf16.mxu0 0
        %1209 = vmatpush2.bf16.xpose.msra.mxu0 0
        %1210 = vmatprep.subr.bf16.mxu0 0
        %1211 = vmatpush2.bf16.xpose.msra.mxu0 0
        %1212 = vmatprep.mubr.bf16.mxu0 %v418
        %1213 = vmatmul.mubr.bf16.gmra.mxu0 %v417
        %v1214 = vpop.f32.mrf.mxu0
        %v1215 = vadd.f32 %v1174, %v1214
        %v1216 = vpop.f32.mrf.mxu0
        %v1217 = vpop.f32.mrf.mxu0
        %v1218 = vadd.f32 %v1177, %v1217
        %v1219 = vpop.f32.mrf.mxu0
        %1220 = vdwg.mxu0
        %1221 = vmatprep.subr.bf16.mxu0 0
        %1222 = vmatpush1.bf16.xpose.msra.mxu0 0
        %1223 = vmatprep.subr.bf16.mxu0 0
        %1224 = vmatpush1.bf16.xpose.msra.mxu0 0
        %1225 = vmatprep.subr.bf16.mxu0 0
        %1226 = vmatpush1.bf16.xpose.msra.mxu0 0
        %1227 = vmatprep.subr.bf16.mxu0 0
        %1228 = vmatpush1.bf16.xpose.msra.mxu0 0
        %1229 = vmatprep.subr.bf16.mxu0 0
        %1230 = vmatpush1.bf16.xpose.msra.mxu0 0
        %1231 = vmatprep.subr.bf16.mxu0 0
        %1232 = vmatpush1.bf16.xpose.msra.mxu0 0
        %1233 = vmatprep.subr.bf16.mxu0 0
        %1234 = vmatpush1.bf16.xpose.msra.mxu0 0
        %1235 = vmatprep.subr.bf16.mxu0 %v612
        %1236 = vmatpush1.bf16.xpose.msra.mxu0 %v611
        %1237 = vmatprep.subr.bf16.mxu0 0
        %1238 = vmatpush2.bf16.xpose.msra.mxu0 0
        %1239 = vmatprep.subr.bf16.mxu0 0
        %1240 = vmatpush2.bf16.xpose.msra.mxu0 0
        %1241 = vmatprep.subr.bf16.mxu0 0
        %1242 = vmatpush2.bf16.xpose.msra.mxu0 0
        %1243 = vmatprep.subr.bf16.mxu0 0
        %1244 = vmatpush2.bf16.xpose.msra.mxu0 0
        %1245 = vmatprep.subr.bf16.mxu0 0
        %1246 = vmatpush2.bf16.xpose.msra.mxu0 0
        %1247 = vmatprep.subr.bf16.mxu0 0
        %1248 = vmatpush2.bf16.xpose.msra.mxu0 0
        %1249 = vmatprep.subr.bf16.mxu0 0
        %1250 = vmatpush2.bf16.xpose.msra.mxu0 0
        %1251 = vmatprep.subr.bf16.mxu0 0
        %1252 = vmatpush2.bf16.xpose.msra.mxu0 0
        %1253 = vmatprep.mubr.bf16.mxu0 %v420
        %1254 = vmatmul.mubr.bf16.gmra.mxu0 %v419
        %v1255 = vpop.f32.mrf.mxu0
        %v1256 = vadd.f32 %v1215, %v1255
        %v1257 = vpop.f32.mrf.mxu0
        %v1258 = vpop.f32.mrf.mxu0
        %v1259 = vadd.f32 %v1218, %v1258
        %v1260 = vpop.f32.mrf.mxu0
        %1261 = vdwg.mxu0
        %1262 = vmatprep.subr.bf16.mxu0 0
        %1263 = vmatpush1.bf16.xpose.msra.mxu0 0
        %1264 = vmatprep.subr.bf16.mxu0 0
        %1265 = vmatpush1.bf16.xpose.msra.mxu0 0
        %1266 = vmatprep.subr.bf16.mxu0 0
        %1267 = vmatpush1.bf16.xpose.msra.mxu0 0
        %1268 = vmatprep.subr.bf16.mxu0 0
        %1269 = vmatpush1.bf16.xpose.msra.mxu0 0
        %1270 = vmatprep.subr.bf16.mxu0 0
        %1271 = vmatpush1.bf16.xpose.msra.mxu0 0
        %1272 = vmatprep.subr.bf16.mxu0 0
        %1273 = vmatpush1.bf16.xpose.msra.mxu0 0
        %1274 = vmatprep.subr.bf16.mxu0 0
        %1275 = vmatpush1.bf16.xpose.msra.mxu0 0
        %1276 = vmatprep.subr.bf16.mxu0 %v614
        %1277 = vmatpush1.bf16.xpose.msra.mxu0 %v613
        %1278 = vmatprep.subr.bf16.mxu0 0
        %1279 = vmatpush2.bf16.xpose.msra.mxu0 0
        %1280 = vmatprep.subr.bf16.mxu0 0
        %1281 = vmatpush2.bf16.xpose.msra.mxu0 0
        %1282 = vmatprep.subr.bf16.mxu0 0
        %1283 = vmatpush2.bf16.xpose.msra.mxu0 0
        %1284 = vmatprep.subr.bf16.mxu0 0
        %1285 = vmatpush2.bf16.xpose.msra.mxu0 0
        %1286 = vmatprep.subr.bf16.mxu0 0
        %1287 = vmatpush2.bf16.xpose.msra.mxu0 0
        %1288 = vmatprep.subr.bf16.mxu0 0
        %1289 = vmatpush2.bf16.xpose.msra.mxu0 0
        %1290 = vmatprep.subr.bf16.mxu0 0
        %1291 = vmatpush2.bf16.xpose.msra.mxu0 0
        %1292 = vmatprep.subr.bf16.mxu0 0
        %1293 = vmatpush2.bf16.xpose.msra.mxu0 0
        %1294 = vmatprep.mubr.bf16.mxu0 %v422
        %1295 = vmatmul.mubr.bf16.gmra.mxu0 %v421
        %v1296 = vpop.f32.mrf.mxu0
        %v1297 = vadd.f32 %v1256, %v1296
        %v1298 = vpop.f32.mrf.mxu0
        %v1299 = vpop.f32.mrf.mxu0
        %v1300 = vadd.f32 %v1259, %v1299
        %v1301 = vpop.f32.mrf.mxu0
        %1302 = vdwg.mxu0
        %1303 = vmatprep.subr.bf16.mxu0 0
        %1304 = vmatpush1.bf16.xpose.msra.mxu0 0
        %1305 = vmatprep.subr.bf16.mxu0 0
        %1306 = vmatpush1.bf16.xpose.msra.mxu0 0
        %1307 = vmatprep.subr.bf16.mxu0 0
        %1308 = vmatpush1.bf16.xpose.msra.mxu0 0
        %1309 = vmatprep.subr.bf16.mxu0 0
        %1310 = vmatpush1.bf16.xpose.msra.mxu0 0
        %1311 = vmatprep.subr.bf16.mxu0 0
        %1312 = vmatpush1.bf16.xpose.msra.mxu0 0
        %1313 = vmatprep.subr.bf16.mxu0 0
        %1314 = vmatpush1.bf16.xpose.msra.mxu0 0
        %1315 = vmatprep.subr.bf16.mxu0 0
        %1316 = vmatpush1.bf16.xpose.msra.mxu0 0
        %1317 = vmatprep.subr.bf16.mxu0 %v616
        %1318 = vmatpush1.bf16.xpose.msra.mxu0 %v615
        %1319 = vmatprep.subr.bf16.mxu0 0
        %1320 = vmatpush2.bf16.xpose.msra.mxu0 0
        %1321 = vmatprep.subr.bf16.mxu0 0
        %1322 = vmatpush2.bf16.xpose.msra.mxu0 0
        %1323 = vmatprep.subr.bf16.mxu0 0
        %1324 = vmatpush2.bf16.xpose.msra.mxu0 0
        %1325 = vmatprep.subr.bf16.mxu0 0
        %1326 = vmatpush2.bf16.xpose.msra.mxu0 0
        %1327 = vmatprep.subr.bf16.mxu0 0
        %1328 = vmatpush2.bf16.xpose.msra.mxu0 0
        %1329 = vmatprep.subr.bf16.mxu0 0
        %1330 = vmatpush2.bf16.xpose.msra.mxu0 0
        %1331 = vmatprep.subr.bf16.mxu0 0
        %1332 = vmatpush2.bf16.xpose.msra.mxu0 0
        %1333 = vmatprep.subr.bf16.mxu0 0
        %1334 = vmatpush2.bf16.xpose.msra.mxu0 0
        %1335 = vmatprep.mubr.bf16.mxu0 %v424
        %1336 = vmatmul.mubr.bf16.gmra.mxu0 %v423
        %v1337 = vpop.f32.mrf.mxu0
        %v1338 = vadd.f32 %v1297, %v1337
        %v1339 = vpop.f32.mrf.mxu0
        %v1340 = vpop.f32.mrf.mxu0
        %v1341 = vadd.f32 %v1300, %v1340
        %v1342 = vpop.f32.mrf.mxu0
        %1343 = vdwg.mxu0
        %1344 = vmatprep.subr.bf16.mxu0 0
        %1345 = vmatpush1.bf16.xpose.msra.mxu0 0
        %1346 = vmatprep.subr.bf16.mxu0 0
        %1347 = vmatpush1.bf16.xpose.msra.mxu0 0
        %1348 = vmatprep.subr.bf16.mxu0 0
        %1349 = vmatpush1.bf16.xpose.msra.mxu0 0
        %1350 = vmatprep.subr.bf16.mxu0 0
        %1351 = vmatpush1.bf16.xpose.msra.mxu0 0
        %1352 = vmatprep.subr.bf16.mxu0 0
        %1353 = vmatpush1.bf16.xpose.msra.mxu0 0
        %1354 = vmatprep.subr.bf16.mxu0 0
        %1355 = vmatpush1.bf16.xpose.msra.mxu0 0
        %1356 = vmatprep.subr.bf16.mxu0 0
        %1357 = vmatpush1.bf16.xpose.msra.mxu0 0
        %1358 = vmatprep.subr.bf16.mxu0 %v618
        %1359 = vmatpush1.bf16.xpose.msra.mxu0 %v617
        %1360 = vmatprep.subr.bf16.mxu0 0
        %1361 = vmatpush2.bf16.xpose.msra.mxu0 0
        %1362 = vmatprep.subr.bf16.mxu0 0
        %1363 = vmatpush2.bf16.xpose.msra.mxu0 0
        %1364 = vmatprep.subr.bf16.mxu0 0
        %1365 = vmatpush2.bf16.xpose.msra.mxu0 0
        %1366 = vmatprep.subr.bf16.mxu0 0
        %1367 = vmatpush2.bf16.xpose.msra.mxu0 0
        %1368 = vmatprep.subr.bf16.mxu0 0
        %1369 = vmatpush2.bf16.xpose.msra.mxu0 0
        %1370 = vmatprep.subr.bf16.mxu0 0
        %1371 = vmatpush2.bf16.xpose.msra.mxu0 0
        %1372 = vmatprep.subr.bf16.mxu0 0
        %1373 = vmatpush2.bf16.xpose.msra.mxu0 0
        %1374 = vmatprep.subr.bf16.mxu0 0
        %1375 = vmatpush2.bf16.xpose.msra.mxu0 0
        %1376 = vmatprep.mubr.bf16.mxu0 %v426
        %1377 = vmatmul.mubr.bf16.gmra.mxu0 %v425
        %v1378 = vpop.f32.mrf.mxu0
        %v1379 = vadd.f32 %v1338, %v1378
        %v1380 = vpop.f32.mrf.mxu0
        %v1381 = vpop.f32.mrf.mxu0
        %v1382 = vadd.f32 %v1341, %v1381
        %v1383 = vpop.f32.mrf.mxu0
        %1384 = vdwg.mxu0
        %1385 = vmatprep.subr.bf16.mxu0 0
        %1386 = vmatpush1.bf16.xpose.msra.mxu0 0
        %1387 = vmatprep.subr.bf16.mxu0 0
        %1388 = vmatpush1.bf16.xpose.msra.mxu0 0
        %1389 = vmatprep.subr.bf16.mxu0 0
        %1390 = vmatpush1.bf16.xpose.msra.mxu0 0
        %1391 = vmatprep.subr.bf16.mxu0 0
        %1392 = vmatpush1.bf16.xpose.msra.mxu0 0
        %1393 = vmatprep.subr.bf16.mxu0 0
        %1394 = vmatpush1.bf16.xpose.msra.mxu0 0
        %1395 = vmatprep.subr.bf16.mxu0 0
        %1396 = vmatpush1.bf16.xpose.msra.mxu0 0
        %1397 = vmatprep.subr.bf16.mxu0 0
        %1398 = vmatpush1.bf16.xpose.msra.mxu0 0
        %1399 = vmatprep.subr.bf16.mxu0 %v620
        %1400 = vmatpush1.bf16.xpose.msra.mxu0 %v619
        %1401 = vmatprep.subr.bf16.mxu0 0
        %1402 = vmatpush2.bf16.xpose.msra.mxu0 0
        %1403 = vmatprep.subr.bf16.mxu0 0
        %1404 = vmatpush2.bf16.xpose.msra.mxu0 0
        %1405 = vmatprep.subr.bf16.mxu0 0
        %1406 = vmatpush2.bf16.xpose.msra.mxu0 0
        %1407 = vmatprep.subr.bf16.mxu0 0
        %1408 = vmatpush2.bf16.xpose.msra.mxu0 0
        %1409 = vmatprep.subr.bf16.mxu0 0
        %1410 = vmatpush2.bf16.xpose.msra.mxu0 0
        %1411 = vmatprep.subr.bf16.mxu0 0
        %1412 = vmatpush2.bf16.xpose.msra.mxu0 0
        %1413 = vmatprep.subr.bf16.mxu0 0
        %1414 = vmatpush2.bf16.xpose.msra.mxu0 0
        %1415 = vmatprep.subr.bf16.mxu0 0
        %1416 = vmatpush2.bf16.xpose.msra.mxu0 0
        %1417 = vmatprep.mubr.bf16.mxu0 %v428
        %1418 = vmatmul.mubr.bf16.gmra.mxu0 %v427
        %v1419 = vpop.f32.mrf.mxu0
        %v1420 = vadd.f32 %v1379, %v1419
        %v1421 = vpop.f32.mrf.mxu0
        %v1422 = vpop.f32.mrf.mxu0
        %v1423 = vadd.f32 %v1382, %v1422
        %v1424 = vpop.f32.mrf.mxu0
        %1425 = vdwg.mxu0
        %1426 = vmatprep.subr.bf16.mxu0 0
        %1427 = vmatpush1.bf16.xpose.msra.mxu0 0
        %1428 = vmatprep.subr.bf16.mxu0 0
        %1429 = vmatpush1.bf16.xpose.msra.mxu0 0
        %1430 = vmatprep.subr.bf16.mxu0 0
        %1431 = vmatpush1.bf16.xpose.msra.mxu0 0
        %1432 = vmatprep.subr.bf16.mxu0 0
        %1433 = vmatpush1.bf16.xpose.msra.mxu0 0
        %1434 = vmatprep.subr.bf16.mxu0 0
        %1435 = vmatpush1.bf16.xpose.msra.mxu0 0
        %1436 = vmatprep.subr.bf16.mxu0 0
        %1437 = vmatpush1.bf16.xpose.msra.mxu0 0
        %1438 = vmatprep.subr.bf16.mxu0 0
        %1439 = vmatpush1.bf16.xpose.msra.mxu0 0
        %1440 = vmatprep.subr.bf16.mxu0 %v622
        %1441 = vmatpush1.bf16.xpose.msra.mxu0 %v621
        %1442 = vmatprep.subr.bf16.mxu0 0
        %1443 = vmatpush2.bf16.xpose.msra.mxu0 0
        %1444 = vmatprep.subr.bf16.mxu0 0
        %1445 = vmatpush2.bf16.xpose.msra.mxu0 0
        %1446 = vmatprep.subr.bf16.mxu0 0
        %1447 = vmatpush2.bf16.xpose.msra.mxu0 0
        %1448 = vmatprep.subr.bf16.mxu0 0
        %1449 = vmatpush2.bf16.xpose.msra.mxu0 0
        %1450 = vmatprep.subr.bf16.mxu0 0
        %1451 = vmatpush2.bf16.xpose.msra.mxu0 0
        %1452 = vmatprep.subr.bf16.mxu0 0
        %1453 = vmatpush2.bf16.xpose.msra.mxu0 0
        %1454 = vmatprep.subr.bf16.mxu0 0
        %1455 = vmatpush2.bf16.xpose.msra.mxu0 0
        %1456 = vmatprep.subr.bf16.mxu0 0
        %1457 = vmatpush2.bf16.xpose.msra.mxu0 0
        %1458 = vmatprep.mubr.bf16.mxu0 %v430
        %1459 = vmatmul.mubr.bf16.gmra.mxu0 %v429
        %v1460 = vpop.f32.mrf.mxu0
        %v1461 = vadd.f32 %v1420, %v1460
        %v1462 = vpop.f32.mrf.mxu0
        %v1463 = vpop.f32.mrf.mxu0
        %v1464 = vadd.f32 %v1423, %v1463
        %v1465 = vpop.f32.mrf.mxu0
        %1466 = vdwg.mxu0
        %1467 = vmatprep.subr.bf16.mxu0 0
        %1468 = vmatpush1.bf16.xpose.msra.mxu0 0
        %1469 = vmatprep.subr.bf16.mxu0 0
        %1470 = vmatpush1.bf16.xpose.msra.mxu0 0
        %1471 = vmatprep.subr.bf16.mxu0 0
        %1472 = vmatpush1.bf16.xpose.msra.mxu0 0
        %1473 = vmatprep.subr.bf16.mxu0 0
        %1474 = vmatpush1.bf16.xpose.msra.mxu0 0
        %1475 = vmatprep.subr.bf16.mxu0 0
        %1476 = vmatpush1.bf16.xpose.msra.mxu0 0
        %1477 = vmatprep.subr.bf16.mxu0 0
        %1478 = vmatpush1.bf16.xpose.msra.mxu0 0
        %1479 = vmatprep.subr.bf16.mxu0 0
        %1480 = vmatpush1.bf16.xpose.msra.mxu0 0
        %1481 = vmatprep.subr.bf16.mxu0 %v624
        %1482 = vmatpush1.bf16.xpose.msra.mxu0 %v623
        %1483 = vmatprep.subr.bf16.mxu0 0
        %1484 = vmatpush2.bf16.xpose.msra.mxu0 0
        %1485 = vmatprep.subr.bf16.mxu0 0
        %1486 = vmatpush2.bf16.xpose.msra.mxu0 0
        %1487 = vmatprep.subr.bf16.mxu0 0
        %1488 = vmatpush2.bf16.xpose.msra.mxu0 0
        %1489 = vmatprep.subr.bf16.mxu0 0
        %1490 = vmatpush2.bf16.xpose.msra.mxu0 0
        %1491 = vmatprep.subr.bf16.mxu0 0
        %1492 = vmatpush2.bf16.xpose.msra.mxu0 0
        %1493 = vmatprep.subr.bf16.mxu0 0
        %1494 = vmatpush2.bf16.xpose.msra.mxu0 0
        %1495 = vmatprep.subr.bf16.mxu0 0
        %1496 = vmatpush2.bf16.xpose.msra.mxu0 0
        %1497 = vmatprep.subr.bf16.mxu0 0
        %1498 = vmatpush2.bf16.xpose.msra.mxu0 0
        %1499 = vmatprep.mubr.bf16.mxu0 %v432
        %1500 = vmatmul.mubr.bf16.gmra.mxu0 %v431
        %v1501 = vpop.f32.mrf.mxu0
        %v1502 = vadd.f32 %v1461, %v1501
        %v1503 = vpop.f32.mrf.mxu0
        %v1504 = vpop.f32.mrf.mxu0
        %v1505 = vadd.f32 %v1464, %v1504
        %v1506 = vpop.f32.mrf.mxu0
        %1507 = vdwg.mxu0
        %1508 = vmatprep.subr.bf16.mxu0 0
        %1509 = vmatpush1.bf16.xpose.msra.mxu0 0
        %1510 = vmatprep.subr.bf16.mxu0 0
        %1511 = vmatpush1.bf16.xpose.msra.mxu0 0
        %1512 = vmatprep.subr.bf16.mxu0 0
        %1513 = vmatpush1.bf16.xpose.msra.mxu0 0
        %1514 = vmatprep.subr.bf16.mxu0 0
        %1515 = vmatpush1.bf16.xpose.msra.mxu0 0
        %1516 = vmatprep.subr.bf16.mxu0 0
        %1517 = vmatpush1.bf16.xpose.msra.mxu0 0
        %1518 = vmatprep.subr.bf16.mxu0 0
        %1519 = vmatpush1.bf16.xpose.msra.mxu0 0
        %1520 = vmatprep.subr.bf16.mxu0 0
        %1521 = vmatpush1.bf16.xpose.msra.mxu0 0
        %1522 = vmatprep.subr.bf16.mxu0 %v626
        %1523 = vmatpush1.bf16.xpose.msra.mxu0 %v625
        %1524 = vmatprep.subr.bf16.mxu0 0
        %1525 = vmatpush2.bf16.xpose.msra.mxu0 0
        %1526 = vmatprep.subr.bf16.mxu0 0
        %1527 = vmatpush2.bf16.xpose.msra.mxu0 0
        %1528 = vmatprep.subr.bf16.mxu0 0
        %1529 = vmatpush2.bf16.xpose.msra.mxu0 0
        %1530 = vmatprep.subr.bf16.mxu0 0
        %1531 = vmatpush2.bf16.xpose.msra.mxu0 0
        %1532 = vmatprep.subr.bf16.mxu0 0
        %1533 = vmatpush2.bf16.xpose.msra.mxu0 0
        %1534 = vmatprep.subr.bf16.mxu0 0
        %1535 = vmatpush2.bf16.xpose.msra.mxu0 0
        %1536 = vmatprep.subr.bf16.mxu0 0
        %1537 = vmatpush2.bf16.xpose.msra.mxu0 0
        %1538 = vmatprep.subr.bf16.mxu0 0
        %1539 = vmatpush2.bf16.xpose.msra.mxu0 0
        %1540 = vmatprep.mubr.bf16.mxu0 %v434
        %1541 = vmatmul.mubr.bf16.gmra.mxu0 %v433
        %v1542 = vpop.f32.mrf.mxu0
        %v1543 = vadd.f32 %v1502, %v1542
        %v1544 = vpop.f32.mrf.mxu0
        %v1545 = vpop.f32.mrf.mxu0
        %v1546 = vadd.f32 %v1505, %v1545
        %v1547 = vpop.f32.mrf.mxu0
        %1548 = vdwg.mxu0
        %1549 = vmatprep.subr.bf16.mxu0 0
        %1550 = vmatpush1.bf16.xpose.msra.mxu0 0
        %1551 = vmatprep.subr.bf16.mxu0 0
        %1552 = vmatpush1.bf16.xpose.msra.mxu0 0
        %1553 = vmatprep.subr.bf16.mxu0 0
        %1554 = vmatpush1.bf16.xpose.msra.mxu0 0
        %1555 = vmatprep.subr.bf16.mxu0 0
        %1556 = vmatpush1.bf16.xpose.msra.mxu0 0
        %1557 = vmatprep.subr.bf16.mxu0 0
        %1558 = vmatpush1.bf16.xpose.msra.mxu0 0
        %1559 = vmatprep.subr.bf16.mxu0 0
        %1560 = vmatpush1.bf16.xpose.msra.mxu0 0
        %1561 = vmatprep.subr.bf16.mxu0 0
        %1562 = vmatpush1.bf16.xpose.msra.mxu0 0
        %1563 = vmatprep.subr.bf16.mxu0 %v628
        %1564 = vmatpush1.bf16.xpose.msra.mxu0 %v627
        %1565 = vmatprep.subr.bf16.mxu0 0
        %1566 = vmatpush2.bf16.xpose.msra.mxu0 0
        %1567 = vmatprep.subr.bf16.mxu0 0
        %1568 = vmatpush2.bf16.xpose.msra.mxu0 0
        %1569 = vmatprep.subr.bf16.mxu0 0
        %1570 = vmatpush2.bf16.xpose.msra.mxu0 0
        %1571 = vmatprep.subr.bf16.mxu0 0
        %1572 = vmatpush2.bf16.xpose.msra.mxu0 0
        %1573 = vmatprep.subr.bf16.mxu0 0
        %1574 = vmatpush2.bf16.xpose.msra.mxu0 0
        %1575 = vmatprep.subr.bf16.mxu0 0
        %1576 = vmatpush2.bf16.xpose.msra.mxu0 0
        %1577 = vmatprep.subr.bf16.mxu0 0
        %1578 = vmatpush2.bf16.xpose.msra.mxu0 0
        %1579 = vmatprep.subr.bf16.mxu0 0
        %1580 = vmatpush2.bf16.xpose.msra.mxu0 0
        %1581 = vmatprep.mubr.bf16.mxu0 %v436
        %1582 = vmatmul.mubr.bf16.gmra.mxu0 %v435
        %v1583 = vpop.f32.mrf.mxu0
        %v1584 = vadd.f32 %v1543, %v1583
        %v1585 = vpop.f32.mrf.mxu0
        %v1586 = vpop.f32.mrf.mxu0
        %v1587 = vadd.f32 %v1546, %v1586
        %v1588 = vpop.f32.mrf.mxu0
        %1589 = vdwg.mxu0
        %1590 = vmatprep.subr.bf16.mxu0 0
        %1591 = vmatpush1.bf16.xpose.msra.mxu0 0
        %1592 = vmatprep.subr.bf16.mxu0 0
        %1593 = vmatpush1.bf16.xpose.msra.mxu0 0
        %1594 = vmatprep.subr.bf16.mxu0 0
        %1595 = vmatpush1.bf16.xpose.msra.mxu0 0
        %1596 = vmatprep.subr.bf16.mxu0 0
        %1597 = vmatpush1.bf16.xpose.msra.mxu0 0
        %1598 = vmatprep.subr.bf16.mxu0 0
        %1599 = vmatpush1.bf16.xpose.msra.mxu0 0
        %1600 = vmatprep.subr.bf16.mxu0 0
        %1601 = vmatpush1.bf16.xpose.msra.mxu0 0
        %1602 = vmatprep.subr.bf16.mxu0 0
        %1603 = vmatpush1.bf16.xpose.msra.mxu0 0
        %1604 = vmatprep.subr.bf16.mxu0 %v630
        %1605 = vmatpush1.bf16.xpose.msra.mxu0 %v629
        %1606 = vmatprep.subr.bf16.mxu0 0
        %1607 = vmatpush2.bf16.xpose.msra.mxu0 0
        %1608 = vmatprep.subr.bf16.mxu0 0
        %1609 = vmatpush2.bf16.xpose.msra.mxu0 0
        %1610 = vmatprep.subr.bf16.mxu0 0
        %1611 = vmatpush2.bf16.xpose.msra.mxu0 0
        %1612 = vmatprep.subr.bf16.mxu0 0
        %1613 = vmatpush2.bf16.xpose.msra.mxu0 0
        %1614 = vmatprep.subr.bf16.mxu0 0
        %1615 = vmatpush2.bf16.xpose.msra.mxu0 0
        %1616 = vmatprep.subr.bf16.mxu0 0
        %1617 = vmatpush2.bf16.xpose.msra.mxu0 0
        %1618 = vmatprep.subr.bf16.mxu0 0
        %1619 = vmatpush2.bf16.xpose.msra.mxu0 0
        %1620 = vmatprep.subr.bf16.mxu0 0
        %1621 = vmatpush2.bf16.xpose.msra.mxu0 0
        %1622 = vmatprep.mubr.bf16.mxu0 %v438
        %1623 = vmatmul.mubr.bf16.gmra.mxu0 %v437
        %v1624 = vpop.f32.mrf.mxu0
        %v1625 = vadd.f32 %v1584, %v1624
        %v1626 = vpop.f32.mrf.mxu0
        %v1627 = vpop.f32.mrf.mxu0
        %v1628 = vadd.f32 %v1587, %v1627
        %v1629 = vpop.f32.mrf.mxu0
        %1630 = vdwg.mxu0
        %1631 = vmatprep.subr.bf16.mxu0 0
        %1632 = vmatpush1.bf16.xpose.msra.mxu0 0
        %1633 = vmatprep.subr.bf16.mxu0 0
        %1634 = vmatpush1.bf16.xpose.msra.mxu0 0
        %1635 = vmatprep.subr.bf16.mxu0 0
        %1636 = vmatpush1.bf16.xpose.msra.mxu0 0
        %1637 = vmatprep.subr.bf16.mxu0 0
        %1638 = vmatpush1.bf16.xpose.msra.mxu0 0
        %1639 = vmatprep.subr.bf16.mxu0 0
        %1640 = vmatpush1.bf16.xpose.msra.mxu0 0
        %1641 = vmatprep.subr.bf16.mxu0 0
        %1642 = vmatpush1.bf16.xpose.msra.mxu0 0
        %1643 = vmatprep.subr.bf16.mxu0 0
        %1644 = vmatpush1.bf16.xpose.msra.mxu0 0
        %1645 = vmatprep.subr.bf16.mxu0 %v632
        %1646 = vmatpush1.bf16.xpose.msra.mxu0 %v631
        %1647 = vmatprep.subr.bf16.mxu0 0
        %1648 = vmatpush2.bf16.xpose.msra.mxu0 0
        %1649 = vmatprep.subr.bf16.mxu0 0
        %1650 = vmatpush2.bf16.xpose.msra.mxu0 0
        %1651 = vmatprep.subr.bf16.mxu0 0
        %1652 = vmatpush2.bf16.xpose.msra.mxu0 0
        %1653 = vmatprep.subr.bf16.mxu0 0
        %1654 = vmatpush2.bf16.xpose.msra.mxu0 0
        %1655 = vmatprep.subr.bf16.mxu0 0
        %1656 = vmatpush2.bf16.xpose.msra.mxu0 0
        %1657 = vmatprep.subr.bf16.mxu0 0
        %1658 = vmatpush2.bf16.xpose.msra.mxu0 0
        %1659 = vmatprep.subr.bf16.mxu0 0
        %1660 = vmatpush2.bf16.xpose.msra.mxu0 0
        %1661 = vmatprep.subr.bf16.mxu0 0
        %1662 = vmatpush2.bf16.xpose.msra.mxu0 0
        %1663 = vmatprep.mubr.bf16.mxu0 %v440
        %1664 = vmatmul.mubr.bf16.gmra.mxu0 %v439
        %v1665 = vpop.f32.mrf.mxu0
        %v1666 = vadd.f32 %v1625, %v1665
        %v1667 = vpop.f32.mrf.mxu0
        %v1668 = vpop.f32.mrf.mxu0
        %v1669 = vadd.f32 %v1628, %v1668
        %v1670 = vpop.f32.mrf.mxu0
        %1671 = vdwg.mxu0
        %1672 = vmatprep.subr.bf16.mxu0 0
        %1673 = vmatpush1.bf16.xpose.msra.mxu0 0
        %1674 = vmatprep.subr.bf16.mxu0 0
        %1675 = vmatpush1.bf16.xpose.msra.mxu0 0
        %1676 = vmatprep.subr.bf16.mxu0 0
        %1677 = vmatpush1.bf16.xpose.msra.mxu0 0
        %1678 = vmatprep.subr.bf16.mxu0 0
        %1679 = vmatpush1.bf16.xpose.msra.mxu0 0
        %1680 = vmatprep.subr.bf16.mxu0 0
        %1681 = vmatpush1.bf16.xpose.msra.mxu0 0
        %1682 = vmatprep.subr.bf16.mxu0 0
        %1683 = vmatpush1.bf16.xpose.msra.mxu0 0
        %1684 = vmatprep.subr.bf16.mxu0 0
        %1685 = vmatpush1.bf16.xpose.msra.mxu0 0
        %1686 = vmatprep.subr.bf16.mxu0 %v634
        %1687 = vmatpush1.bf16.xpose.msra.mxu0 %v633
        %1688 = vmatprep.subr.bf16.mxu0 0
        %1689 = vmatpush2.bf16.xpose.msra.mxu0 0
        %1690 = vmatprep.subr.bf16.mxu0 0
        %1691 = vmatpush2.bf16.xpose.msra.mxu0 0
        %1692 = vmatprep.subr.bf16.mxu0 0
        %1693 = vmatpush2.bf16.xpose.msra.mxu0 0
        %1694 = vmatprep.subr.bf16.mxu0 0
        %1695 = vmatpush2.bf16.xpose.msra.mxu0 0
        %1696 = vmatprep.subr.bf16.mxu0 0
        %1697 = vmatpush2.bf16.xpose.msra.mxu0 0
        %1698 = vmatprep.subr.bf16.mxu0 0
        %1699 = vmatpush2.bf16.xpose.msra.mxu0 0
        %1700 = vmatprep.subr.bf16.mxu0 0
        %1701 = vmatpush2.bf16.xpose.msra.mxu0 0
        %1702 = vmatprep.subr.bf16.mxu0 0
        %1703 = vmatpush2.bf16.xpose.msra.mxu0 0
        %1704 = vmatprep.mubr.bf16.mxu0 %v442
        %1705 = vmatmul.mubr.bf16.gmra.mxu0 %v441
        %v1706 = vpop.f32.mrf.mxu0
        %v1707 = vadd.f32 %v1666, %v1706
        %v1708 = vpop.f32.mrf.mxu0
        %v1709 = vpop.f32.mrf.mxu0
        %v1710 = vadd.f32 %v1669, %v1709
        %v1711 = vpop.f32.mrf.mxu0
        %1712 = vdwg.mxu0
        %1713 = vmatprep.subr.bf16.mxu0 0
        %1714 = vmatpush1.bf16.xpose.msra.mxu0 0
        %1715 = vmatprep.subr.bf16.mxu0 0
        %1716 = vmatpush1.bf16.xpose.msra.mxu0 0
        %1717 = vmatprep.subr.bf16.mxu0 0
        %1718 = vmatpush1.bf16.xpose.msra.mxu0 0
        %1719 = vmatprep.subr.bf16.mxu0 0
        %1720 = vmatpush1.bf16.xpose.msra.mxu0 0
        %1721 = vmatprep.subr.bf16.mxu0 0
        %1722 = vmatpush1.bf16.xpose.msra.mxu0 0
        %1723 = vmatprep.subr.bf16.mxu0 0
        %1724 = vmatpush1.bf16.xpose.msra.mxu0 0
        %1725 = vmatprep.subr.bf16.mxu0 0
        %1726 = vmatpush1.bf16.xpose.msra.mxu0 0
        %1727 = vmatprep.subr.bf16.mxu0 %v636
        %1728 = vmatpush1.bf16.xpose.msra.mxu0 %v635
        %1729 = vmatprep.subr.bf16.mxu0 0
        %1730 = vmatpush2.bf16.xpose.msra.mxu0 0
        %1731 = vmatprep.subr.bf16.mxu0 0
        %1732 = vmatpush2.bf16.xpose.msra.mxu0 0
        %1733 = vmatprep.subr.bf16.mxu0 0
        %1734 = vmatpush2.bf16.xpose.msra.mxu0 0
        %1735 = vmatprep.subr.bf16.mxu0 0
        %1736 = vmatpush2.bf16.xpose.msra.mxu0 0
        %1737 = vmatprep.subr.bf16.mxu0 0
        %1738 = vmatpush2.bf16.xpose.msra.mxu0 0
        %1739 = vmatprep.subr.bf16.mxu0 0
        %1740 = vmatpush2.bf16.xpose.msra.mxu0 0
        %1741 = vmatprep.subr.bf16.mxu0 0
        %1742 = vmatpush2.bf16.xpose.msra.mxu0 0
        %1743 = vmatprep.subr.bf16.mxu0 0
        %1744 = vmatpush2.bf16.xpose.msra.mxu0 0
        %1745 = vmatprep.mubr.bf16.mxu0 %v444
        %1746 = vmatmul.mubr.bf16.gmra.mxu0 %v443
        %v1747 = vpop.f32.mrf.mxu0
        %v1748 = vadd.f32 %v1707, %v1747
        %v1749 = vpop.f32.mrf.mxu0
        %v1750 = vpop.f32.mrf.mxu0
        %v1751 = vadd.f32 %v1710, %v1750
        %v1752 = vpop.f32.mrf.mxu0
        %1753 = vdwg.mxu0
        %1754 = vmatprep.subr.bf16.mxu0 0
        %1755 = vmatpush1.bf16.xpose.msra.mxu0 0
        %1756 = vmatprep.subr.bf16.mxu0 0
        %1757 = vmatpush1.bf16.xpose.msra.mxu0 0
        %1758 = vmatprep.subr.bf16.mxu0 0
        %1759 = vmatpush1.bf16.xpose.msra.mxu0 0
        %1760 = vmatprep.subr.bf16.mxu0 0
        %1761 = vmatpush1.bf16.xpose.msra.mxu0 0
        %1762 = vmatprep.subr.bf16.mxu0 0
        %1763 = vmatpush1.bf16.xpose.msra.mxu0 0
        %1764 = vmatprep.subr.bf16.mxu0 0
        %1765 = vmatpush1.bf16.xpose.msra.mxu0 0
        %1766 = vmatprep.subr.bf16.mxu0 0
        %1767 = vmatpush1.bf16.xpose.msra.mxu0 0
        %1768 = vmatprep.subr.bf16.mxu0 %v638
        %1769 = vmatpush1.bf16.xpose.msra.mxu0 %v637
        %1770 = vmatprep.subr.bf16.mxu0 0
        %1771 = vmatpush2.bf16.xpose.msra.mxu0 0
        %1772 = vmatprep.subr.bf16.mxu0 0
        %1773 = vmatpush2.bf16.xpose.msra.mxu0 0
        %1774 = vmatprep.subr.bf16.mxu0 0
        %1775 = vmatpush2.bf16.xpose.msra.mxu0 0
        %1776 = vmatprep.subr.bf16.mxu0 0
        %1777 = vmatpush2.bf16.xpose.msra.mxu0 0
        %1778 = vmatprep.subr.bf16.mxu0 0
        %1779 = vmatpush2.bf16.xpose.msra.mxu0 0
        %1780 = vmatprep.subr.bf16.mxu0 0
        %1781 = vmatpush2.bf16.xpose.msra.mxu0 0
        %1782 = vmatprep.subr.bf16.mxu0 0
        %1783 = vmatpush2.bf16.xpose.msra.mxu0 0
        %1784 = vmatprep.subr.bf16.mxu0 0
        %1785 = vmatpush2.bf16.xpose.msra.mxu0 0
        %1786 = vmatprep.mubr.bf16.mxu0 %v446
        %1787 = vmatmul.mubr.bf16.gmra.mxu0 %v445
        %v1788 = vpop.f32.mrf.mxu0
        %v1789 = vadd.f32 %v1748, %v1788
        %v1790 = vpop.f32.mrf.mxu0
        %v1791 = vpop.f32.mrf.mxu0
        %v1792 = vadd.f32 %v1751, %v1791
        %v1793 = vpop.f32.mrf.mxu0
        %1794 = vdwg.mxu0
        %1795 = vmatprep.subr.bf16.mxu0 0
        %1796 = vmatpush1.bf16.xpose.msra.mxu0 0
        %1797 = vmatprep.subr.bf16.mxu0 0
        %1798 = vmatpush1.bf16.xpose.msra.mxu0 0
        %1799 = vmatprep.subr.bf16.mxu0 0
        %1800 = vmatpush1.bf16.xpose.msra.mxu0 0
        %1801 = vmatprep.subr.bf16.mxu0 0
        %1802 = vmatpush1.bf16.xpose.msra.mxu0 0
        %1803 = vmatprep.subr.bf16.mxu0 0
        %1804 = vmatpush1.bf16.xpose.msra.mxu0 0
        %1805 = vmatprep.subr.bf16.mxu0 0
        %1806 = vmatpush1.bf16.xpose.msra.mxu0 0
        %1807 = vmatprep.subr.bf16.mxu0 0
        %1808 = vmatpush1.bf16.xpose.msra.mxu0 0
        %1809 = vmatprep.subr.bf16.mxu0 %v640
        %1810 = vmatpush1.bf16.xpose.msra.mxu0 %v639
        %1811 = vmatprep.subr.bf16.mxu0 0
        %1812 = vmatpush2.bf16.xpose.msra.mxu0 0
        %1813 = vmatprep.subr.bf16.mxu0 0
        %1814 = vmatpush2.bf16.xpose.msra.mxu0 0
        %1815 = vmatprep.subr.bf16.mxu0 0
        %1816 = vmatpush2.bf16.xpose.msra.mxu0 0
        %1817 = vmatprep.subr.bf16.mxu0 0
        %1818 = vmatpush2.bf16.xpose.msra.mxu0 0
        %1819 = vmatprep.subr.bf16.mxu0 0
        %1820 = vmatpush2.bf16.xpose.msra.mxu0 0
        %1821 = vmatprep.subr.bf16.mxu0 0
        %1822 = vmatpush2.bf16.xpose.msra.mxu0 0
        %1823 = vmatprep.subr.bf16.mxu0 0
        %1824 = vmatpush2.bf16.xpose.msra.mxu0 0
        %1825 = vmatprep.subr.bf16.mxu0 0
        %1826 = vmatpush2.bf16.xpose.msra.mxu0 0
        %1827 = vmatprep.mubr.bf16.mxu0 %v448
        %1828 = vmatmul.mubr.bf16.gmra.mxu0 %v447
        %v1829 = vpop.f32.mrf.mxu0
        %v1830 = vadd.f32 %v1789, %v1829
        %v1831 = vpop.f32.mrf.mxu0
        %v1832 = vpop.f32.mrf.mxu0
        %v1833 = vadd.f32 %v1792, %v1832
        %v1834 = vpop.f32.mrf.mxu0
        %1835 = vdwg.mxu0
        %1836 = vmatprep.subr.bf16.mxu0 0
        %1837 = vmatpush1.bf16.xpose.msra.mxu0 0
        %1838 = vmatprep.subr.bf16.mxu0 0
        %1839 = vmatpush1.bf16.xpose.msra.mxu0 0
        %1840 = vmatprep.subr.bf16.mxu0 0
        %1841 = vmatpush1.bf16.xpose.msra.mxu0 0
        %1842 = vmatprep.subr.bf16.mxu0 0
        %1843 = vmatpush1.bf16.xpose.msra.mxu0 0
        %1844 = vmatprep.subr.bf16.mxu0 0
        %1845 = vmatpush1.bf16.xpose.msra.mxu0 0
        %1846 = vmatprep.subr.bf16.mxu0 0
        %1847 = vmatpush1.bf16.xpose.msra.mxu0 0
        %1848 = vmatprep.subr.bf16.mxu0 0
        %1849 = vmatpush1.bf16.xpose.msra.mxu0 0
        %1850 = vmatprep.subr.bf16.mxu0 %v642
        %1851 = vmatpush1.bf16.xpose.msra.mxu0 %v641
        %1852 = vmatprep.subr.bf16.mxu0 0
        %1853 = vmatpush2.bf16.xpose.msra.mxu0 0
        %1854 = vmatprep.subr.bf16.mxu0 0
        %1855 = vmatpush2.bf16.xpose.msra.mxu0 0
        %1856 = vmatprep.subr.bf16.mxu0 0
        %1857 = vmatpush2.bf16.xpose.msra.mxu0 0
        %1858 = vmatprep.subr.bf16.mxu0 0
        %1859 = vmatpush2.bf16.xpose.msra.mxu0 0
        %1860 = vmatprep.subr.bf16.mxu0 0
        %1861 = vmatpush2.bf16.xpose.msra.mxu0 0
        %1862 = vmatprep.subr.bf16.mxu0 0
        %1863 = vmatpush2.bf16.xpose.msra.mxu0 0
        %1864 = vmatprep.subr.bf16.mxu0 0
        %1865 = vmatpush2.bf16.xpose.msra.mxu0 0
        %1866 = vmatprep.subr.bf16.mxu0 0
        %1867 = vmatpush2.bf16.xpose.msra.mxu0 0
        %1868 = vmatprep.mubr.bf16.mxu0 %v450
        %1869 = vmatmul.mubr.bf16.gmra.mxu0 %v449
        %v1870 = vpop.f32.mrf.mxu0
        %v1871 = vadd.f32 %v1830, %v1870
        %v1872 = vpop.f32.mrf.mxu0
        %v1873 = vpop.f32.mrf.mxu0
        %v1874 = vadd.f32 %v1833, %v1873
        %v1875 = vpop.f32.mrf.mxu0
        %1876 = vdwg.mxu0
        %1877 = vmatprep.subr.bf16.mxu0 0
        %1878 = vmatpush1.bf16.xpose.msra.mxu0 0
        %1879 = vmatprep.subr.bf16.mxu0 0
        %1880 = vmatpush1.bf16.xpose.msra.mxu0 0
        %1881 = vmatprep.subr.bf16.mxu0 0
        %1882 = vmatpush1.bf16.xpose.msra.mxu0 0
        %1883 = vmatprep.subr.bf16.mxu0 0
        %1884 = vmatpush1.bf16.xpose.msra.mxu0 0
        %1885 = vmatprep.subr.bf16.mxu0 0
        %1886 = vmatpush1.bf16.xpose.msra.mxu0 0
        %1887 = vmatprep.subr.bf16.mxu0 0
        %1888 = vmatpush1.bf16.xpose.msra.mxu0 0
        %1889 = vmatprep.subr.bf16.mxu0 0
        %1890 = vmatpush1.bf16.xpose.msra.mxu0 0
        %1891 = vmatprep.subr.bf16.mxu0 %v644
        %1892 = vmatpush1.bf16.xpose.msra.mxu0 %v643
        %1893 = vmatprep.subr.bf16.mxu0 0
        %1894 = vmatpush2.bf16.xpose.msra.mxu0 0
        %1895 = vmatprep.subr.bf16.mxu0 0
        %1896 = vmatpush2.bf16.xpose.msra.mxu0 0
        %1897 = vmatprep.subr.bf16.mxu0 0
        %1898 = vmatpush2.bf16.xpose.msra.mxu0 0
        %1899 = vmatprep.subr.bf16.mxu0 0
        %1900 = vmatpush2.bf16.xpose.msra.mxu0 0
        %1901 = vmatprep.subr.bf16.mxu0 0
        %1902 = vmatpush2.bf16.xpose.msra.mxu0 0
        %1903 = vmatprep.subr.bf16.mxu0 0
        %1904 = vmatpush2.bf16.xpose.msra.mxu0 0
        %1905 = vmatprep.subr.bf16.mxu0 0
        %1906 = vmatpush2.bf16.xpose.msra.mxu0 0
        %1907 = vmatprep.subr.bf16.mxu0 0
        %1908 = vmatpush2.bf16.xpose.msra.mxu0 0
        %1909 = vmatprep.mubr.bf16.mxu0 %v452
        %1910 = vmatmul.mubr.bf16.gmra.mxu0 %v451
        %v1911 = vpop.f32.mrf.mxu0
        %v1912 = vadd.f32 %v1871, %v1911
        %v1913 = vpop.f32.mrf.mxu0
        %v1914 = vpop.f32.mrf.mxu0
        %v1915 = vadd.f32 %v1874, %v1914
        %v1916 = vpop.f32.mrf.mxu0
        %1917 = vdwg.mxu0
        %1918 = vmatprep.subr.bf16.mxu0 0
        %1919 = vmatpush1.bf16.xpose.msra.mxu0 0
        %1920 = vmatprep.subr.bf16.mxu0 0
        %1921 = vmatpush1.bf16.xpose.msra.mxu0 0
        %1922 = vmatprep.subr.bf16.mxu0 0
        %1923 = vmatpush1.bf16.xpose.msra.mxu0 0
        %1924 = vmatprep.subr.bf16.mxu0 0
        %1925 = vmatpush1.bf16.xpose.msra.mxu0 0
        %1926 = vmatprep.subr.bf16.mxu0 0
        %1927 = vmatpush1.bf16.xpose.msra.mxu0 0
        %1928 = vmatprep.subr.bf16.mxu0 0
        %1929 = vmatpush1.bf16.xpose.msra.mxu0 0
        %1930 = vmatprep.subr.bf16.mxu0 0
        %1931 = vmatpush1.bf16.xpose.msra.mxu0 0
        %1932 = vmatprep.subr.bf16.mxu0 %v646
        %1933 = vmatpush1.bf16.xpose.msra.mxu0 %v645
        %1934 = vmatprep.subr.bf16.mxu0 0
        %1935 = vmatpush2.bf16.xpose.msra.mxu0 0
        %1936 = vmatprep.subr.bf16.mxu0 0
        %1937 = vmatpush2.bf16.xpose.msra.mxu0 0
        %1938 = vmatprep.subr.bf16.mxu0 0
        %1939 = vmatpush2.bf16.xpose.msra.mxu0 0
        %1940 = vmatprep.subr.bf16.mxu0 0
        %1941 = vmatpush2.bf16.xpose.msra.mxu0 0
        %1942 = vmatprep.subr.bf16.mxu0 0
        %1943 = vmatpush2.bf16.xpose.msra.mxu0 0
        %1944 = vmatprep.subr.bf16.mxu0 0
        %1945 = vmatpush2.bf16.xpose.msra.mxu0 0
        %1946 = vmatprep.subr.bf16.mxu0 0
        %1947 = vmatpush2.bf16.xpose.msra.mxu0 0
        %1948 = vmatprep.subr.bf16.mxu0 0
        %1949 = vmatpush2.bf16.xpose.msra.mxu0 0
        %1950 = vmatprep.mubr.bf16.mxu0 %v454
        %1951 = vmatmul.mubr.bf16.gmra.mxu0 %v453
        %v1952 = vpop.f32.mrf.mxu0
        %v1953 = vadd.f32 %v1912, %v1952
        %v1954 = vpop.f32.mrf.mxu0
        %v1955 = vpop.f32.mrf.mxu0
        %v1956 = vadd.f32 %v1915, %v1955
        %v1957 = vpop.f32.mrf.mxu0
        %1958 = vdwg.mxu0
        %1959 = vmatprep.subr.bf16.mxu0 0
        %1960 = vmatpush1.bf16.xpose.msra.mxu0 0
        %1961 = vmatprep.subr.bf16.mxu0 0
        %1962 = vmatpush1.bf16.xpose.msra.mxu0 0
        %1963 = vmatprep.subr.bf16.mxu0 0
        %1964 = vmatpush1.bf16.xpose.msra.mxu0 0
        %1965 = vmatprep.subr.bf16.mxu0 0
        %1966 = vmatpush1.bf16.xpose.msra.mxu0 0
        %1967 = vmatprep.subr.bf16.mxu0 0
        %1968 = vmatpush1.bf16.xpose.msra.mxu0 0
        %1969 = vmatprep.subr.bf16.mxu0 0
        %1970 = vmatpush1.bf16.xpose.msra.mxu0 0
        %1971 = vmatprep.subr.bf16.mxu0 0
        %1972 = vmatpush1.bf16.xpose.msra.mxu0 0
        %1973 = vmatprep.subr.bf16.mxu0 %v648
        %1974 = vmatpush1.bf16.xpose.msra.mxu0 %v647
        %1975 = vmatprep.subr.bf16.mxu0 0
        %1976 = vmatpush2.bf16.xpose.msra.mxu0 0
        %1977 = vmatprep.subr.bf16.mxu0 0
        %1978 = vmatpush2.bf16.xpose.msra.mxu0 0
        %1979 = vmatprep.subr.bf16.mxu0 0
        %1980 = vmatpush2.bf16.xpose.msra.mxu0 0
        %1981 = vmatprep.subr.bf16.mxu0 0
        %1982 = vmatpush2.bf16.xpose.msra.mxu0 0
        %1983 = vmatprep.subr.bf16.mxu0 0
        %1984 = vmatpush2.bf16.xpose.msra.mxu0 0
        %1985 = vmatprep.subr.bf16.mxu0 0
        %1986 = vmatpush2.bf16.xpose.msra.mxu0 0
        %1987 = vmatprep.subr.bf16.mxu0 0
        %1988 = vmatpush2.bf16.xpose.msra.mxu0 0
        %1989 = vmatprep.subr.bf16.mxu0 0
        %1990 = vmatpush2.bf16.xpose.msra.mxu0 0
        %1991 = vmatprep.mubr.bf16.mxu0 %v456
        %1992 = vmatmul.mubr.bf16.gmra.mxu0 %v455
        %v1993 = vpop.f32.mrf.mxu0
        %v1994 = vadd.f32 %v1953, %v1993
        %v1995 = vpop.f32.mrf.mxu0
        %v1996 = vpop.f32.mrf.mxu0
        %v1997 = vadd.f32 %v1956, %v1996
        %v1998 = vpop.f32.mrf.mxu0
        %1999 = vdwg.mxu0
        %2000 = vmatprep.subr.bf16.mxu0 0
        %2001 = vmatpush1.bf16.xpose.msra.mxu0 0
        %2002 = vmatprep.subr.bf16.mxu0 0
        %2003 = vmatpush1.bf16.xpose.msra.mxu0 0
        %2004 = vmatprep.subr.bf16.mxu0 0
        %2005 = vmatpush1.bf16.xpose.msra.mxu0 0
        %2006 = vmatprep.subr.bf16.mxu0 0
        %2007 = vmatpush1.bf16.xpose.msra.mxu0 0
        %2008 = vmatprep.subr.bf16.mxu0 0
        %2009 = vmatpush1.bf16.xpose.msra.mxu0 0
        %2010 = vmatprep.subr.bf16.mxu0 0
        %2011 = vmatpush1.bf16.xpose.msra.mxu0 0
        %2012 = vmatprep.subr.bf16.mxu0 0
        %2013 = vmatpush1.bf16.xpose.msra.mxu0 0
        %2014 = vmatprep.subr.bf16.mxu0 %v650
        %2015 = vmatpush1.bf16.xpose.msra.mxu0 %v649
        %2016 = vmatprep.subr.bf16.mxu0 0
        %2017 = vmatpush2.bf16.xpose.msra.mxu0 0
        %2018 = vmatprep.subr.bf16.mxu0 0
        %2019 = vmatpush2.bf16.xpose.msra.mxu0 0
        %2020 = vmatprep.subr.bf16.mxu0 0
        %2021 = vmatpush2.bf16.xpose.msra.mxu0 0
        %2022 = vmatprep.subr.bf16.mxu0 0
        %2023 = vmatpush2.bf16.xpose.msra.mxu0 0
        %2024 = vmatprep.subr.bf16.mxu0 0
        %2025 = vmatpush2.bf16.xpose.msra.mxu0 0
        %2026 = vmatprep.subr.bf16.mxu0 0
        %2027 = vmatpush2.bf16.xpose.msra.mxu0 0
        %2028 = vmatprep.subr.bf16.mxu0 0
        %2029 = vmatpush2.bf16.xpose.msra.mxu0 0
        %2030 = vmatprep.subr.bf16.mxu0 0
        %2031 = vmatpush2.bf16.xpose.msra.mxu0 0
        %2032 = vmatprep.mubr.bf16.mxu0 %v458
        %2033 = vmatmul.mubr.bf16.gmra.mxu0 %v457
        %v2034 = vpop.f32.mrf.mxu0
        %v2035 = vadd.f32 %v1994, %v2034
        %v2036 = vpop.f32.mrf.mxu0
        %v2037 = vpop.f32.mrf.mxu0
        %v2038 = vadd.f32 %v1997, %v2037
        %v2039 = vpop.f32.mrf.mxu0
        %2040 = vdwg.mxu0
        %2041 = vmatprep.subr.bf16.mxu0 0
        %2042 = vmatpush1.bf16.xpose.msra.mxu0 0
        %2043 = vmatprep.subr.bf16.mxu0 0
        %2044 = vmatpush1.bf16.xpose.msra.mxu0 0
        %2045 = vmatprep.subr.bf16.mxu0 0
        %2046 = vmatpush1.bf16.xpose.msra.mxu0 0
        %2047 = vmatprep.subr.bf16.mxu0 0
        %2048 = vmatpush1.bf16.xpose.msra.mxu0 0
        %2049 = vmatprep.subr.bf16.mxu0 0
        %2050 = vmatpush1.bf16.xpose.msra.mxu0 0
        %2051 = vmatprep.subr.bf16.mxu0 0
        %2052 = vmatpush1.bf16.xpose.msra.mxu0 0
        %2053 = vmatprep.subr.bf16.mxu0 0
        %2054 = vmatpush1.bf16.xpose.msra.mxu0 0
        %2055 = vmatprep.subr.bf16.mxu0 %v652
        %2056 = vmatpush1.bf16.xpose.msra.mxu0 %v651
        %2057 = vmatprep.subr.bf16.mxu0 0
        %2058 = vmatpush2.bf16.xpose.msra.mxu0 0
        %2059 = vmatprep.subr.bf16.mxu0 0
        %2060 = vmatpush2.bf16.xpose.msra.mxu0 0
        %2061 = vmatprep.subr.bf16.mxu0 0
        %2062 = vmatpush2.bf16.xpose.msra.mxu0 0
        %2063 = vmatprep.subr.bf16.mxu0 0
        %2064 = vmatpush2.bf16.xpose.msra.mxu0 0
        %2065 = vmatprep.subr.bf16.mxu0 0
        %2066 = vmatpush2.bf16.xpose.msra.mxu0 0
        %2067 = vmatprep.subr.bf16.mxu0 0
        %2068 = vmatpush2.bf16.xpose.msra.mxu0 0
        %2069 = vmatprep.subr.bf16.mxu0 0
        %2070 = vmatpush2.bf16.xpose.msra.mxu0 0
        %2071 = vmatprep.subr.bf16.mxu0 0
        %2072 = vmatpush2.bf16.xpose.msra.mxu0 0
        %2073 = vmatprep.mubr.bf16.mxu0 %v460
        %2074 = vmatmul.mubr.bf16.gmra.mxu0 %v459
        %v2075 = vpop.f32.mrf.mxu0
        %v2076 = vadd.f32 %v2035, %v2075
        %v2077 = vpop.f32.mrf.mxu0
        %v2078 = vpop.f32.mrf.mxu0
        %v2079 = vadd.f32 %v2038, %v2078
        %v2080 = vpop.f32.mrf.mxu0
        %2081 = vdwg.mxu0
        %2082 = vmatprep.subr.bf16.mxu0 0
        %2083 = vmatpush1.bf16.xpose.msra.mxu0 0
        %2084 = vmatprep.subr.bf16.mxu0 0
        %2085 = vmatpush1.bf16.xpose.msra.mxu0 0
        %2086 = vmatprep.subr.bf16.mxu0 0
        %2087 = vmatpush1.bf16.xpose.msra.mxu0 0
        %2088 = vmatprep.subr.bf16.mxu0 0
        %2089 = vmatpush1.bf16.xpose.msra.mxu0 0
        %2090 = vmatprep.subr.bf16.mxu0 0
        %2091 = vmatpush1.bf16.xpose.msra.mxu0 0
        %2092 = vmatprep.subr.bf16.mxu0 0
        %2093 = vmatpush1.bf16.xpose.msra.mxu0 0
        %2094 = vmatprep.subr.bf16.mxu0 0
        %2095 = vmatpush1.bf16.xpose.msra.mxu0 0
        %2096 = vmatprep.subr.bf16.mxu0 %v654
        %2097 = vmatpush1.bf16.xpose.msra.mxu0 %v653
        %2098 = vmatprep.subr.bf16.mxu0 0
        %2099 = vmatpush2.bf16.xpose.msra.mxu0 0
        %2100 = vmatprep.subr.bf16.mxu0 0
        %2101 = vmatpush2.bf16.xpose.msra.mxu0 0
        %2102 = vmatprep.subr.bf16.mxu0 0
        %2103 = vmatpush2.bf16.xpose.msra.mxu0 0
        %2104 = vmatprep.subr.bf16.mxu0 0
        %2105 = vmatpush2.bf16.xpose.msra.mxu0 0
        %2106 = vmatprep.subr.bf16.mxu0 0
        %2107 = vmatpush2.bf16.xpose.msra.mxu0 0
        %2108 = vmatprep.subr.bf16.mxu0 0
        %2109 = vmatpush2.bf16.xpose.msra.mxu0 0
        %2110 = vmatprep.subr.bf16.mxu0 0
        %2111 = vmatpush2.bf16.xpose.msra.mxu0 0
        %2112 = vmatprep.subr.bf16.mxu0 0
        %2113 = vmatpush2.bf16.xpose.msra.mxu0 0
        %2114 = vmatprep.mubr.bf16.mxu0 %v462
        %2115 = vmatmul.mubr.bf16.gmra.mxu0 %v461
        %v2116 = vpop.f32.mrf.mxu0
        %v2117 = vadd.f32 %v2076, %v2116
        %v2118 = vpop.f32.mrf.mxu0
        %v2119 = vpop.f32.mrf.mxu0
        %v2120 = vadd.f32 %v2079, %v2119
        %v2121 = vpop.f32.mrf.mxu0
        %2122 = vdwg.mxu0
        %2123 = vmatprep.subr.bf16.mxu0 0
        %2124 = vmatpush1.bf16.xpose.msra.mxu0 0
        %2125 = vmatprep.subr.bf16.mxu0 0
        %2126 = vmatpush1.bf16.xpose.msra.mxu0 0
        %2127 = vmatprep.subr.bf16.mxu0 0
        %2128 = vmatpush1.bf16.xpose.msra.mxu0 0
        %2129 = vmatprep.subr.bf16.mxu0 0
        %2130 = vmatpush1.bf16.xpose.msra.mxu0 0
        %2131 = vmatprep.subr.bf16.mxu0 0
        %2132 = vmatpush1.bf16.xpose.msra.mxu0 0
        %2133 = vmatprep.subr.bf16.mxu0 0
        %2134 = vmatpush1.bf16.xpose.msra.mxu0 0
        %2135 = vmatprep.subr.bf16.mxu0 0
        %2136 = vmatpush1.bf16.xpose.msra.mxu0 0
        %2137 = vmatprep.subr.bf16.mxu0 %v656
        %2138 = vmatpush1.bf16.xpose.msra.mxu0 %v655
        %2139 = vmatprep.subr.bf16.mxu0 0
        %2140 = vmatpush2.bf16.xpose.msra.mxu0 0
        %2141 = vmatprep.subr.bf16.mxu0 0
        %2142 = vmatpush2.bf16.xpose.msra.mxu0 0
        %2143 = vmatprep.subr.bf16.mxu0 0
        %2144 = vmatpush2.bf16.xpose.msra.mxu0 0
        %2145 = vmatprep.subr.bf16.mxu0 0
        %2146 = vmatpush2.bf16.xpose.msra.mxu0 0
        %2147 = vmatprep.subr.bf16.mxu0 0
        %2148 = vmatpush2.bf16.xpose.msra.mxu0 0
        %2149 = vmatprep.subr.bf16.mxu0 0
        %2150 = vmatpush2.bf16.xpose.msra.mxu0 0
        %2151 = vmatprep.subr.bf16.mxu0 0
        %2152 = vmatpush2.bf16.xpose.msra.mxu0 0
        %2153 = vmatprep.subr.bf16.mxu0 0
        %2154 = vmatpush2.bf16.xpose.msra.mxu0 0
        %2155 = vmatprep.mubr.bf16.mxu0 %v464
        %2156 = vmatmul.mubr.bf16.gmra.mxu0 %v463
        %v2157 = vpop.f32.mrf.mxu0
        %v2158 = vadd.f32 %v2117, %v2157
        %v2159 = vpop.f32.mrf.mxu0
        %v2160 = vpop.f32.mrf.mxu0
        %v2161 = vadd.f32 %v2120, %v2160
        %v2162 = vpop.f32.mrf.mxu0
        %2163 = vdwg.mxu0
        %2164 = vmatprep.subr.bf16.mxu0 0
        %2165 = vmatpush1.bf16.xpose.msra.mxu0 0
        %2166 = vmatprep.subr.bf16.mxu0 0
        %2167 = vmatpush1.bf16.xpose.msra.mxu0 0
        %2168 = vmatprep.subr.bf16.mxu0 0
        %2169 = vmatpush1.bf16.xpose.msra.mxu0 0
        %2170 = vmatprep.subr.bf16.mxu0 0
        %2171 = vmatpush1.bf16.xpose.msra.mxu0 0
        %2172 = vmatprep.subr.bf16.mxu0 0
        %2173 = vmatpush1.bf16.xpose.msra.mxu0 0
        %2174 = vmatprep.subr.bf16.mxu0 0
        %2175 = vmatpush1.bf16.xpose.msra.mxu0 0
        %2176 = vmatprep.subr.bf16.mxu0 0
        %2177 = vmatpush1.bf16.xpose.msra.mxu0 0
        %2178 = vmatprep.subr.bf16.mxu0 %v658
        %2179 = vmatpush1.bf16.xpose.msra.mxu0 %v657
        %2180 = vmatprep.subr.bf16.mxu0 0
        %2181 = vmatpush2.bf16.xpose.msra.mxu0 0
        %2182 = vmatprep.subr.bf16.mxu0 0
        %2183 = vmatpush2.bf16.xpose.msra.mxu0 0
        %2184 = vmatprep.subr.bf16.mxu0 0
        %2185 = vmatpush2.bf16.xpose.msra.mxu0 0
        %2186 = vmatprep.subr.bf16.mxu0 0
        %2187 = vmatpush2.bf16.xpose.msra.mxu0 0
        %2188 = vmatprep.subr.bf16.mxu0 0
        %2189 = vmatpush2.bf16.xpose.msra.mxu0 0
        %2190 = vmatprep.subr.bf16.mxu0 0
        %2191 = vmatpush2.bf16.xpose.msra.mxu0 0
        %2192 = vmatprep.subr.bf16.mxu0 0
        %2193 = vmatpush2.bf16.xpose.msra.mxu0 0
        %2194 = vmatprep.subr.bf16.mxu0 0
        %2195 = vmatpush2.bf16.xpose.msra.mxu0 0
        %2196 = vmatprep.mubr.bf16.mxu0 %v466
        %2197 = vmatmul.mubr.bf16.gmra.mxu0 %v465
        %v2198 = vpop.f32.mrf.mxu0
        %v2199 = vadd.f32 %v2158, %v2198
        %v2200 = vpop.f32.mrf.mxu0
        %v2201 = vpop.f32.mrf.mxu0
        %v2202 = vadd.f32 %v2161, %v2201
        %v2203 = vpop.f32.mrf.mxu0
        %2204 = vdwg.mxu0
        %2205 = vmatprep.subr.bf16.mxu0 0
        %2206 = vmatpush1.bf16.xpose.msra.mxu0 0
        %2207 = vmatprep.subr.bf16.mxu0 0
        %2208 = vmatpush1.bf16.xpose.msra.mxu0 0
        %2209 = vmatprep.subr.bf16.mxu0 0
        %2210 = vmatpush1.bf16.xpose.msra.mxu0 0
        %2211 = vmatprep.subr.bf16.mxu0 0
        %2212 = vmatpush1.bf16.xpose.msra.mxu0 0
        %2213 = vmatprep.subr.bf16.mxu0 0
        %2214 = vmatpush1.bf16.xpose.msra.mxu0 0
        %2215 = vmatprep.subr.bf16.mxu0 0
        %2216 = vmatpush1.bf16.xpose.msra.mxu0 0
        %2217 = vmatprep.subr.bf16.mxu0 0
        %2218 = vmatpush1.bf16.xpose.msra.mxu0 0
        %2219 = vmatprep.subr.bf16.mxu0 %v660
        %2220 = vmatpush1.bf16.xpose.msra.mxu0 %v659
        %2221 = vmatprep.subr.bf16.mxu0 0
        %2222 = vmatpush2.bf16.xpose.msra.mxu0 0
        %2223 = vmatprep.subr.bf16.mxu0 0
        %2224 = vmatpush2.bf16.xpose.msra.mxu0 0
        %2225 = vmatprep.subr.bf16.mxu0 0
        %2226 = vmatpush2.bf16.xpose.msra.mxu0 0
        %2227 = vmatprep.subr.bf16.mxu0 0
        %2228 = vmatpush2.bf16.xpose.msra.mxu0 0
        %2229 = vmatprep.subr.bf16.mxu0 0
        %2230 = vmatpush2.bf16.xpose.msra.mxu0 0
        %2231 = vmatprep.subr.bf16.mxu0 0
        %2232 = vmatpush2.bf16.xpose.msra.mxu0 0
        %2233 = vmatprep.subr.bf16.mxu0 0
        %2234 = vmatpush2.bf16.xpose.msra.mxu0 0
        %2235 = vmatprep.subr.bf16.mxu0 0
        %2236 = vmatpush2.bf16.xpose.msra.mxu0 0
        %2237 = vmatprep.mubr.bf16.mxu0 %v468
        %2238 = vmatmul.mubr.bf16.gmra.mxu0 %v467
        %v2239 = vpop.f32.mrf.mxu0
        %v2240 = vadd.f32 %v2199, %v2239
        %v2241 = vpop.f32.mrf.mxu0
        %v2242 = vpop.f32.mrf.mxu0
        %v2243 = vadd.f32 %v2202, %v2242
        %v2244 = vpop.f32.mrf.mxu0
        %2245 = vdwg.mxu0
        %2246 = vmatprep.subr.bf16.mxu0 0
        %2247 = vmatpush1.bf16.xpose.msra.mxu0 0
        %2248 = vmatprep.subr.bf16.mxu0 0
        %2249 = vmatpush1.bf16.xpose.msra.mxu0 0
        %2250 = vmatprep.subr.bf16.mxu0 0
        %2251 = vmatpush1.bf16.xpose.msra.mxu0 0
        %2252 = vmatprep.subr.bf16.mxu0 0
        %2253 = vmatpush1.bf16.xpose.msra.mxu0 0
        %2254 = vmatprep.subr.bf16.mxu0 0
        %2255 = vmatpush1.bf16.xpose.msra.mxu0 0
        %2256 = vmatprep.subr.bf16.mxu0 0
        %2257 = vmatpush1.bf16.xpose.msra.mxu0 0
        %2258 = vmatprep.subr.bf16.mxu0 0
        %2259 = vmatpush1.bf16.xpose.msra.mxu0 0
        %2260 = vmatprep.subr.bf16.mxu0 %v662
        %2261 = vmatpush1.bf16.xpose.msra.mxu0 %v661
        %2262 = vmatprep.subr.bf16.mxu0 0
        %2263 = vmatpush2.bf16.xpose.msra.mxu0 0
        %2264 = vmatprep.subr.bf16.mxu0 0
        %2265 = vmatpush2.bf16.xpose.msra.mxu0 0
        %2266 = vmatprep.subr.bf16.mxu0 0
        %2267 = vmatpush2.bf16.xpose.msra.mxu0 0
        %2268 = vmatprep.subr.bf16.mxu0 0
        %2269 = vmatpush2.bf16.xpose.msra.mxu0 0
        %2270 = vmatprep.subr.bf16.mxu0 0
        %2271 = vmatpush2.bf16.xpose.msra.mxu0 0
        %2272 = vmatprep.subr.bf16.mxu0 0
        %2273 = vmatpush2.bf16.xpose.msra.mxu0 0
        %2274 = vmatprep.subr.bf16.mxu0 0
        %2275 = vmatpush2.bf16.xpose.msra.mxu0 0
        %2276 = vmatprep.subr.bf16.mxu0 0
        %2277 = vmatpush2.bf16.xpose.msra.mxu0 0
        %2278 = vmatprep.mubr.bf16.mxu0 %v470
        %2279 = vmatmul.mubr.bf16.gmra.mxu0 %v469
        %v2280 = vpop.f32.mrf.mxu0
        %v2281 = vadd.f32 %v2240, %v2280
        %v2282 = vpop.f32.mrf.mxu0
        %v2283 = vpop.f32.mrf.mxu0
        %v2284 = vadd.f32 %v2243, %v2283
        %v2285 = vpop.f32.mrf.mxu0
        %2286 = vdwg.mxu0
        %2287 = vmatprep.subr.bf16.mxu0 0
        %2288 = vmatpush1.bf16.xpose.msra.mxu0 0
        %2289 = vmatprep.subr.bf16.mxu0 0
        %2290 = vmatpush1.bf16.xpose.msra.mxu0 0
        %2291 = vmatprep.subr.bf16.mxu0 0
        %2292 = vmatpush1.bf16.xpose.msra.mxu0 0
        %2293 = vmatprep.subr.bf16.mxu0 0
        %2294 = vmatpush1.bf16.xpose.msra.mxu0 0
        %2295 = vmatprep.subr.bf16.mxu0 0
        %2296 = vmatpush1.bf16.xpose.msra.mxu0 0
        %2297 = vmatprep.subr.bf16.mxu0 0
        %2298 = vmatpush1.bf16.xpose.msra.mxu0 0
        %2299 = vmatprep.subr.bf16.mxu0 0
        %2300 = vmatpush1.bf16.xpose.msra.mxu0 0
        %2301 = vmatprep.subr.bf16.mxu0 %v664
        %2302 = vmatpush1.bf16.xpose.msra.mxu0 %v663
        %2303 = vmatprep.subr.bf16.mxu0 0
        %2304 = vmatpush2.bf16.xpose.msra.mxu0 0
        %2305 = vmatprep.subr.bf16.mxu0 0
        %2306 = vmatpush2.bf16.xpose.msra.mxu0 0
        %2307 = vmatprep.subr.bf16.mxu0 0
        %2308 = vmatpush2.bf16.xpose.msra.mxu0 0
        %2309 = vmatprep.subr.bf16.mxu0 0
        %2310 = vmatpush2.bf16.xpose.msra.mxu0 0
        %2311 = vmatprep.subr.bf16.mxu0 0
        %2312 = vmatpush2.bf16.xpose.msra.mxu0 0
        %2313 = vmatprep.subr.bf16.mxu0 0
        %2314 = vmatpush2.bf16.xpose.msra.mxu0 0
        %2315 = vmatprep.subr.bf16.mxu0 0
        %2316 = vmatpush2.bf16.xpose.msra.mxu0 0
        %2317 = vmatprep.subr.bf16.mxu0 0
        %2318 = vmatpush2.bf16.xpose.msra.mxu0 0
        %2319 = vmatprep.mubr.bf16.mxu0 %v472
        %2320 = vmatmul.mubr.bf16.gmra.mxu0 %v471
        %v2321 = vpop.f32.mrf.mxu0
        %v2322 = vadd.f32 %v2281, %v2321
        %v2323 = vpop.f32.mrf.mxu0
        %v2324 = vpop.f32.mrf.mxu0
        %v2325 = vadd.f32 %v2284, %v2324
        %v2326 = vpop.f32.mrf.mxu0
        %2327 = vdwg.mxu0
        %2328 = vmatprep.subr.bf16.mxu0 0
        %2329 = vmatpush1.bf16.xpose.msra.mxu0 0
        %2330 = vmatprep.subr.bf16.mxu0 0
        %2331 = vmatpush1.bf16.xpose.msra.mxu0 0
        %2332 = vmatprep.subr.bf16.mxu0 0
        %2333 = vmatpush1.bf16.xpose.msra.mxu0 0
        %2334 = vmatprep.subr.bf16.mxu0 0
        %2335 = vmatpush1.bf16.xpose.msra.mxu0 0
        %2336 = vmatprep.subr.bf16.mxu0 0
        %2337 = vmatpush1.bf16.xpose.msra.mxu0 0
        %2338 = vmatprep.subr.bf16.mxu0 0
        %2339 = vmatpush1.bf16.xpose.msra.mxu0 0
        %2340 = vmatprep.subr.bf16.mxu0 0
        %2341 = vmatpush1.bf16.xpose.msra.mxu0 0
        %2342 = vmatprep.subr.bf16.mxu0 %v666
        %2343 = vmatpush1.bf16.xpose.msra.mxu0 %v665
        %2344 = vmatprep.subr.bf16.mxu0 0
        %2345 = vmatpush2.bf16.xpose.msra.mxu0 0
        %2346 = vmatprep.subr.bf16.mxu0 0
        %2347 = vmatpush2.bf16.xpose.msra.mxu0 0
        %2348 = vmatprep.subr.bf16.mxu0 0
        %2349 = vmatpush2.bf16.xpose.msra.mxu0 0
        %2350 = vmatprep.subr.bf16.mxu0 0
        %2351 = vmatpush2.bf16.xpose.msra.mxu0 0
        %2352 = vmatprep.subr.bf16.mxu0 0
        %2353 = vmatpush2.bf16.xpose.msra.mxu0 0
        %2354 = vmatprep.subr.bf16.mxu0 0
        %2355 = vmatpush2.bf16.xpose.msra.mxu0 0
        %2356 = vmatprep.subr.bf16.mxu0 0
        %2357 = vmatpush2.bf16.xpose.msra.mxu0 0
        %2358 = vmatprep.subr.bf16.mxu0 0
        %2359 = vmatpush2.bf16.xpose.msra.mxu0 0
        %2360 = vmatprep.mubr.bf16.mxu0 %v474
        %2361 = vmatmul.mubr.bf16.gmra.mxu0 %v473
        %v2362 = vpop.f32.mrf.mxu0
        %v2363 = vadd.f32 %v2322, %v2362
        %v2364 = vpop.f32.mrf.mxu0
        %v2365 = vpop.f32.mrf.mxu0
        %v2366 = vadd.f32 %v2325, %v2365
        %v2367 = vpop.f32.mrf.mxu0
        %2368 = vdwg.mxu0
        %2369 = vmatprep.subr.bf16.mxu0 0
        %2370 = vmatpush1.bf16.xpose.msra.mxu0 0
        %2371 = vmatprep.subr.bf16.mxu0 0
        %2372 = vmatpush1.bf16.xpose.msra.mxu0 0
        %2373 = vmatprep.subr.bf16.mxu0 0
        %2374 = vmatpush1.bf16.xpose.msra.mxu0 0
        %2375 = vmatprep.subr.bf16.mxu0 0
        %2376 = vmatpush1.bf16.xpose.msra.mxu0 0
        %2377 = vmatprep.subr.bf16.mxu0 0
        %2378 = vmatpush1.bf16.xpose.msra.mxu0 0
        %2379 = vmatprep.subr.bf16.mxu0 0
        %2380 = vmatpush1.bf16.xpose.msra.mxu0 0
        %2381 = vmatprep.subr.bf16.mxu0 0
        %2382 = vmatpush1.bf16.xpose.msra.mxu0 0
        %2383 = vmatprep.subr.bf16.mxu0 %v668
        %2384 = vmatpush1.bf16.xpose.msra.mxu0 %v667
        %2385 = vmatprep.subr.bf16.mxu0 0
        %2386 = vmatpush2.bf16.xpose.msra.mxu0 0
        %2387 = vmatprep.subr.bf16.mxu0 0
        %2388 = vmatpush2.bf16.xpose.msra.mxu0 0
        %2389 = vmatprep.subr.bf16.mxu0 0
        %2390 = vmatpush2.bf16.xpose.msra.mxu0 0
        %2391 = vmatprep.subr.bf16.mxu0 0
        %2392 = vmatpush2.bf16.xpose.msra.mxu0 0
        %2393 = vmatprep.subr.bf16.mxu0 0
        %2394 = vmatpush2.bf16.xpose.msra.mxu0 0
        %2395 = vmatprep.subr.bf16.mxu0 0
        %2396 = vmatpush2.bf16.xpose.msra.mxu0 0
        %2397 = vmatprep.subr.bf16.mxu0 0
        %2398 = vmatpush2.bf16.xpose.msra.mxu0 0
        %2399 = vmatprep.subr.bf16.mxu0 0
        %2400 = vmatpush2.bf16.xpose.msra.mxu0 0
        %2401 = vmatprep.mubr.bf16.mxu0 %v476
        %2402 = vmatmul.mubr.bf16.gmra.mxu0 %v475
        %v2403 = vpop.f32.mrf.mxu0
        %v2404 = vadd.f32 %v2363, %v2403
        %v2405 = vpop.f32.mrf.mxu0
        %v2406 = vpop.f32.mrf.mxu0
        %v2407 = vadd.f32 %v2366, %v2406
        %v2408 = vpop.f32.mrf.mxu0
        %2409 = vdwg.mxu0
        %2410 = vmatprep.subr.bf16.mxu0 0
        %2411 = vmatpush1.bf16.xpose.msra.mxu0 0
        %2412 = vmatprep.subr.bf16.mxu0 0
        %2413 = vmatpush1.bf16.xpose.msra.mxu0 0
        %2414 = vmatprep.subr.bf16.mxu0 0
        %2415 = vmatpush1.bf16.xpose.msra.mxu0 0
        %2416 = vmatprep.subr.bf16.mxu0 0
        %2417 = vmatpush1.bf16.xpose.msra.mxu0 0
        %2418 = vmatprep.subr.bf16.mxu0 0
        %2419 = vmatpush1.bf16.xpose.msra.mxu0 0
        %2420 = vmatprep.subr.bf16.mxu0 0
        %2421 = vmatpush1.bf16.xpose.msra.mxu0 0
        %2422 = vmatprep.subr.bf16.mxu0 0
        %2423 = vmatpush1.bf16.xpose.msra.mxu0 0
        %2424 = vmatprep.subr.bf16.mxu0 %v670
        %2425 = vmatpush1.bf16.xpose.msra.mxu0 %v669
        %2426 = vmatprep.subr.bf16.mxu0 0
        %2427 = vmatpush2.bf16.xpose.msra.mxu0 0
        %2428 = vmatprep.subr.bf16.mxu0 0
        %2429 = vmatpush2.bf16.xpose.msra.mxu0 0
        %2430 = vmatprep.subr.bf16.mxu0 0
        %2431 = vmatpush2.bf16.xpose.msra.mxu0 0
        %2432 = vmatprep.subr.bf16.mxu0 0
        %2433 = vmatpush2.bf16.xpose.msra.mxu0 0
        %2434 = vmatprep.subr.bf16.mxu0 0
        %2435 = vmatpush2.bf16.xpose.msra.mxu0 0
        %2436 = vmatprep.subr.bf16.mxu0 0
        %2437 = vmatpush2.bf16.xpose.msra.mxu0 0
        %2438 = vmatprep.subr.bf16.mxu0 0
        %2439 = vmatpush2.bf16.xpose.msra.mxu0 0
        %2440 = vmatprep.subr.bf16.mxu0 0
        %2441 = vmatpush2.bf16.xpose.msra.mxu0 0
        %2442 = vmatprep.mubr.bf16.mxu0 %v478
        %2443 = vmatmul.mubr.bf16.gmra.mxu0 %v477
        %v2444 = vpop.f32.mrf.mxu0
        %v2445 = vadd.f32 %v2404, %v2444
        %v2446 = vpop.f32.mrf.mxu0
        %v2447 = vpop.f32.mrf.mxu0
        %v2448 = vadd.f32 %v2407, %v2447
        %v2449 = vpop.f32.mrf.mxu0
        %2450 = vdwg.mxu0
        %2451 = vmatprep.subr.bf16.mxu0 0
        %2452 = vmatpush1.bf16.xpose.msra.mxu0 0
        %2453 = vmatprep.subr.bf16.mxu0 0
        %2454 = vmatpush1.bf16.xpose.msra.mxu0 0
        %2455 = vmatprep.subr.bf16.mxu0 0
        %2456 = vmatpush1.bf16.xpose.msra.mxu0 0
        %2457 = vmatprep.subr.bf16.mxu0 0
        %2458 = vmatpush1.bf16.xpose.msra.mxu0 0
        %2459 = vmatprep.subr.bf16.mxu0 0
        %2460 = vmatpush1.bf16.xpose.msra.mxu0 0
        %2461 = vmatprep.subr.bf16.mxu0 0
        %2462 = vmatpush1.bf16.xpose.msra.mxu0 0
        %2463 = vmatprep.subr.bf16.mxu0 0
        %2464 = vmatpush1.bf16.xpose.msra.mxu0 0
        %2465 = vmatprep.subr.bf16.mxu0 %v672
        %2466 = vmatpush1.bf16.xpose.msra.mxu0 %v671
        %2467 = vmatprep.subr.bf16.mxu0 0
        %2468 = vmatpush2.bf16.xpose.msra.mxu0 0
        %2469 = vmatprep.subr.bf16.mxu0 0
        %2470 = vmatpush2.bf16.xpose.msra.mxu0 0
        %2471 = vmatprep.subr.bf16.mxu0 0
        %2472 = vmatpush2.bf16.xpose.msra.mxu0 0
        %2473 = vmatprep.subr.bf16.mxu0 0
        %2474 = vmatpush2.bf16.xpose.msra.mxu0 0
        %2475 = vmatprep.subr.bf16.mxu0 0
        %2476 = vmatpush2.bf16.xpose.msra.mxu0 0
        %2477 = vmatprep.subr.bf16.mxu0 0
        %2478 = vmatpush2.bf16.xpose.msra.mxu0 0
        %2479 = vmatprep.subr.bf16.mxu0 0
        %2480 = vmatpush2.bf16.xpose.msra.mxu0 0
        %2481 = vmatprep.subr.bf16.mxu0 0
        %2482 = vmatpush2.bf16.xpose.msra.mxu0 0
        %2483 = vmatprep.mubr.bf16.mxu0 %v480
        %2484 = vmatmul.mubr.bf16.gmra.mxu0 %v479
        %v2485 = vpop.f32.mrf.mxu0
        %v2486 = vadd.f32 %v2445, %v2485
        %v2487 = vpop.f32.mrf.mxu0
        %v2488 = vpop.f32.mrf.mxu0
        %v2489 = vadd.f32 %v2448, %v2488
        %v2490 = vpop.f32.mrf.mxu0
        %2491 = vdwg.mxu0
        %2492 = vmatprep.subr.bf16.mxu0 0
        %2493 = vmatpush1.bf16.xpose.msra.mxu0 0
        %2494 = vmatprep.subr.bf16.mxu0 0
        %2495 = vmatpush1.bf16.xpose.msra.mxu0 0
        %2496 = vmatprep.subr.bf16.mxu0 0
        %2497 = vmatpush1.bf16.xpose.msra.mxu0 0
        %2498 = vmatprep.subr.bf16.mxu0 0
        %2499 = vmatpush1.bf16.xpose.msra.mxu0 0
        %2500 = vmatprep.subr.bf16.mxu0 0
        %2501 = vmatpush1.bf16.xpose.msra.mxu0 0
        %2502 = vmatprep.subr.bf16.mxu0 0
        %2503 = vmatpush1.bf16.xpose.msra.mxu0 0
        %2504 = vmatprep.subr.bf16.mxu0 0
        %2505 = vmatpush1.bf16.xpose.msra.mxu0 0
        %2506 = vmatprep.subr.bf16.mxu0 %v674
        %2507 = vmatpush1.bf16.xpose.msra.mxu0 %v673
        %2508 = vmatprep.subr.bf16.mxu0 0
        %2509 = vmatpush2.bf16.xpose.msra.mxu0 0
        %2510 = vmatprep.subr.bf16.mxu0 0
        %2511 = vmatpush2.bf16.xpose.msra.mxu0 0
        %2512 = vmatprep.subr.bf16.mxu0 0
        %2513 = vmatpush2.bf16.xpose.msra.mxu0 0
        %2514 = vmatprep.subr.bf16.mxu0 0
        %2515 = vmatpush2.bf16.xpose.msra.mxu0 0
        %2516 = vmatprep.subr.bf16.mxu0 0
        %2517 = vmatpush2.bf16.xpose.msra.mxu0 0
        %2518 = vmatprep.subr.bf16.mxu0 0
        %2519 = vmatpush2.bf16.xpose.msra.mxu0 0
        %2520 = vmatprep.subr.bf16.mxu0 0
        %2521 = vmatpush2.bf16.xpose.msra.mxu0 0
        %2522 = vmatprep.subr.bf16.mxu0 0
        %2523 = vmatpush2.bf16.xpose.msra.mxu0 0
        %2524 = vmatprep.mubr.bf16.mxu0 %v482
        %2525 = vmatmul.mubr.bf16.gmra.mxu0 %v481
        %v2526 = vpop.f32.mrf.mxu0
        %v2527 = vadd.f32 %v2486, %v2526
        %v2528 = vpop.f32.mrf.mxu0
        %v2529 = vpop.f32.mrf.mxu0
        %v2530 = vadd.f32 %v2489, %v2529
        %v2531 = vpop.f32.mrf.mxu0
        %2532 = vdwg.mxu0
        %2533 = vmatprep.subr.bf16.mxu0 0
        %2534 = vmatpush1.bf16.xpose.msra.mxu0 0
        %2535 = vmatprep.subr.bf16.mxu0 0
        %2536 = vmatpush1.bf16.xpose.msra.mxu0 0
        %2537 = vmatprep.subr.bf16.mxu0 0
        %2538 = vmatpush1.bf16.xpose.msra.mxu0 0
        %2539 = vmatprep.subr.bf16.mxu0 0
        %2540 = vmatpush1.bf16.xpose.msra.mxu0 0
        %2541 = vmatprep.subr.bf16.mxu0 0
        %2542 = vmatpush1.bf16.xpose.msra.mxu0 0
        %2543 = vmatprep.subr.bf16.mxu0 0
        %2544 = vmatpush1.bf16.xpose.msra.mxu0 0
        %2545 = vmatprep.subr.bf16.mxu0 0
        %2546 = vmatpush1.bf16.xpose.msra.mxu0 0
        %2547 = vmatprep.subr.bf16.mxu0 %v676
        %2548 = vmatpush1.bf16.xpose.msra.mxu0 %v675
        %2549 = vmatprep.subr.bf16.mxu0 0
        %2550 = vmatpush2.bf16.xpose.msra.mxu0 0
        %2551 = vmatprep.subr.bf16.mxu0 0
        %2552 = vmatpush2.bf16.xpose.msra.mxu0 0
        %2553 = vmatprep.subr.bf16.mxu0 0
        %2554 = vmatpush2.bf16.xpose.msra.mxu0 0
        %2555 = vmatprep.subr.bf16.mxu0 0
        %2556 = vmatpush2.bf16.xpose.msra.mxu0 0
        %2557 = vmatprep.subr.bf16.mxu0 0
        %2558 = vmatpush2.bf16.xpose.msra.mxu0 0
        %2559 = vmatprep.subr.bf16.mxu0 0
        %2560 = vmatpush2.bf16.xpose.msra.mxu0 0
        %2561 = vmatprep.subr.bf16.mxu0 0
        %2562 = vmatpush2.bf16.xpose.msra.mxu0 0
        %2563 = vmatprep.subr.bf16.mxu0 0
        %2564 = vmatpush2.bf16.xpose.msra.mxu0 0
        %2565 = vmatprep.mubr.bf16.mxu0 %v484
        %2566 = vmatmul.mubr.bf16.gmra.mxu0 %v483
        %v2567 = vpop.f32.mrf.mxu0
        %v2568 = vadd.f32 %v2527, %v2567
        %v2569 = vpop.f32.mrf.mxu0
        %v2570 = vpop.f32.mrf.mxu0
        %v2571 = vadd.f32 %v2530, %v2570
        %v2572 = vpop.f32.mrf.mxu0
        %2573 = vdwg.mxu0
        %2574 = vmatprep.subr.bf16.mxu0 0
        %2575 = vmatpush1.bf16.xpose.msra.mxu0 0
        %2576 = vmatprep.subr.bf16.mxu0 0
        %2577 = vmatpush1.bf16.xpose.msra.mxu0 0
        %2578 = vmatprep.subr.bf16.mxu0 0
        %2579 = vmatpush1.bf16.xpose.msra.mxu0 0
        %2580 = vmatprep.subr.bf16.mxu0 0
        %2581 = vmatpush1.bf16.xpose.msra.mxu0 0
        %2582 = vmatprep.subr.bf16.mxu0 0
        %2583 = vmatpush1.bf16.xpose.msra.mxu0 0
        %2584 = vmatprep.subr.bf16.mxu0 0
        %2585 = vmatpush1.bf16.xpose.msra.mxu0 0
        %2586 = vmatprep.subr.bf16.mxu0 0
        %2587 = vmatpush1.bf16.xpose.msra.mxu0 0
        %2588 = vmatprep.subr.bf16.mxu0 %v678
        %2589 = vmatpush1.bf16.xpose.msra.mxu0 %v677
        %2590 = vmatprep.subr.bf16.mxu0 0
        %2591 = vmatpush2.bf16.xpose.msra.mxu0 0
        %2592 = vmatprep.subr.bf16.mxu0 0
        %2593 = vmatpush2.bf16.xpose.msra.mxu0 0
        %2594 = vmatprep.subr.bf16.mxu0 0
        %2595 = vmatpush2.bf16.xpose.msra.mxu0 0
        %2596 = vmatprep.subr.bf16.mxu0 0
        %2597 = vmatpush2.bf16.xpose.msra.mxu0 0
        %2598 = vmatprep.subr.bf16.mxu0 0
        %2599 = vmatpush2.bf16.xpose.msra.mxu0 0
        %2600 = vmatprep.subr.bf16.mxu0 0
        %2601 = vmatpush2.bf16.xpose.msra.mxu0 0
        %2602 = vmatprep.subr.bf16.mxu0 0
        %2603 = vmatpush2.bf16.xpose.msra.mxu0 0
        %2604 = vmatprep.subr.bf16.mxu0 0
        %2605 = vmatpush2.bf16.xpose.msra.mxu0 0
        %2606 = vmatprep.mubr.bf16.mxu0 %v486
        %2607 = vmatmul.mubr.bf16.gmra.mxu0 %v485
        %v2608 = vpop.f32.mrf.mxu0
        %v2609 = vadd.f32 %v2568, %v2608
        %v2610 = vpop.f32.mrf.mxu0
        %v2611 = vpop.f32.mrf.mxu0
        %v2612 = vadd.f32 %v2571, %v2611
        %v2613 = vpop.f32.mrf.mxu0
        %2614 = vdwg.mxu0
        %2615 = vmatprep.subr.bf16.mxu0 0
        %2616 = vmatpush1.bf16.xpose.msra.mxu0 0
        %2617 = vmatprep.subr.bf16.mxu0 0
        %2618 = vmatpush1.bf16.xpose.msra.mxu0 0
        %2619 = vmatprep.subr.bf16.mxu0 0
        %2620 = vmatpush1.bf16.xpose.msra.mxu0 0
        %2621 = vmatprep.subr.bf16.mxu0 0
        %2622 = vmatpush1.bf16.xpose.msra.mxu0 0
        %2623 = vmatprep.subr.bf16.mxu0 0
        %2624 = vmatpush1.bf16.xpose.msra.mxu0 0
        %2625 = vmatprep.subr.bf16.mxu0 0
        %2626 = vmatpush1.bf16.xpose.msra.mxu0 0
        %2627 = vmatprep.subr.bf16.mxu0 0
        %2628 = vmatpush1.bf16.xpose.msra.mxu0 0
        %2629 = vmatprep.subr.bf16.mxu0 %v680
        %2630 = vmatpush1.bf16.xpose.msra.mxu0 %v679
        %2631 = vmatprep.subr.bf16.mxu0 0
        %2632 = vmatpush2.bf16.xpose.msra.mxu0 0
        %2633 = vmatprep.subr.bf16.mxu0 0
        %2634 = vmatpush2.bf16.xpose.msra.mxu0 0
        %2635 = vmatprep.subr.bf16.mxu0 0
        %2636 = vmatpush2.bf16.xpose.msra.mxu0 0
        %2637 = vmatprep.subr.bf16.mxu0 0
        %2638 = vmatpush2.bf16.xpose.msra.mxu0 0
        %2639 = vmatprep.subr.bf16.mxu0 0
        %2640 = vmatpush2.bf16.xpose.msra.mxu0 0
        %2641 = vmatprep.subr.bf16.mxu0 0
        %2642 = vmatpush2.bf16.xpose.msra.mxu0 0
        %2643 = vmatprep.subr.bf16.mxu0 0
        %2644 = vmatpush2.bf16.xpose.msra.mxu0 0
        %2645 = vmatprep.subr.bf16.mxu0 0
        %2646 = vmatpush2.bf16.xpose.msra.mxu0 0
        %2647 = vmatprep.mubr.bf16.mxu0 %v488
        %2648 = vmatmul.mubr.bf16.gmra.mxu0 %v487
        %v2649 = vpop.f32.mrf.mxu0
        %v2650 = vadd.f32 %v2609, %v2649
        %v2651 = vpop.f32.mrf.mxu0
        %v2652 = vpop.f32.mrf.mxu0
        %v2653 = vadd.f32 %v2612, %v2652
        %v2654 = vpop.f32.mrf.mxu0
        %2655 = vdwg.mxu0
        %vm2656 = vcmask 48128
        %2657 = vst.msk [vmem:[%s177] sm:$0xff] %vm2656, %v2650
        %2658 = vst.msk [vmem:[%s177 + $0x8] sm:$0xff] %vm2656, %v2653
        %s2659 = sand.u32 %s90, 1
        %s2660 = sand.u32 %s90, 1
        %s2661 = smul.addr %s2660, 16
        %s2662 = scalar_lea.vmem [#allocation2], %s2661
        // Predicated region
        $region33: #{linear_classifier_forward.1} parent=31 // pred_check
          %p2663 = pneg %p100
        $region34: #{linear_classifier_forward.1} parent=31 // pred_check_branch
          %2665 = sbr.rel (%p2663) target = $region36
        $region35: #{linear_classifier_forward.1} parent=31 // pred_region
          %s2666 = smul.u32 2, %s14
          %s2667 = ssub.s32 3, %s2666
          %p2668 = scmp.lt.s32.totalorder %s2667, 2
          %s2669 = scalar_select %p2668, %s2667, 2
          %s2670 = smul.u32 128, %s2669
          %p2671 = scmp.ne.s32.totalorder 0, %s2670
          %s2672 = smul.addr %s2666, 8
          %s2673 = scalar_lea.vmem %s3, %s2672
          // Predicated region
          $region37: #{linear_classifier_forward.1} parent=35 // pred_check
            %p2674 = pneg %p2671
          $region38: #{linear_classifier_forward.1} parent=35 // pred_check_branch
            %2676 = sbr.rel (%p2674) target = $region40
          $region39: #{linear_classifier_forward.1} parent=35 // pred_region
            // Predicated region
            $region41: #{linear_classifier_forward.1} parent=39 // pred_check
              _
            $region42: #{linear_classifier_forward.1} parent=39 // pred_check_branch
              %2678 = sbr.rel (0) target = $region44
            $region43: #{linear_classifier_forward.1} parent=39 // pred_region
              // Predicated region
              $region63: #{linear_classifier_forward.1} parent=43 // pred_check
                _
              $region64: #{linear_classifier_forward.1} parent=43 // pred_check_branch
                %2730 = sbr.rel (0) target = $region66
              $region65: #{linear_classifier_forward.1} parent=43 // pred_region
                %s2731 = sshrl.u32 %s2669, 1
                // While loop
                $region67: #{linear_classifier_forward.1} parent=65 // loop_pre_header
                  _
                $region68: #{linear_classifier_forward.1} parent=65 // loop_header
                  %s2733 = sphi 0, %s2735
                  %p2734 = scmp.ge.s32.totalorder %s2733, %s2731
                  %s2738 = sphi 0, %s2747
                  %s2739 = sphi %s2662, %s2750
                  %s2740 = sphi %s2673, %s2751
                $region69: #{linear_classifier_forward.1} parent=65 // loop_header_branch
                  %2737 = sbr.rel (%p2734) target = $region73
                $region70: #{linear_classifier_forward.1} parent=65 // loop_body
                  %v2741 = vld [vmem:[%s2739] sm:$0xff]
                  %2742 = vst [vmem:[%s2740] sm:$0xff] %v2741
                  %v2743 = vld [vmem:[%s2739 + $0x8] sm:$0xff]
                  %2744 = vst [vmem:[%s2740 + $0x8] sm:$0xff] %v2743
                  %s2745 = sadd.s32 1, %s2738
                  %p2746 = scmp.ge.s32.totalorder %s2745, %s2731
                  %s2747 = scalar_select %p2746, 0, %s2745
                  %s2748 = smul.u32 %s2747, 16
                  %s2749 = smul.u32 %s2747, 16
                  %s2750 = scalar_lea.vmem %s2662, %s2748 [#allocation2]
                  %s2751 = scalar_lea.vmem %s2673, %s2749
                $region71: #{linear_classifier_forward.1} parent=65 // loop_footer
                  %s2735 = sadd.s32 %s2733, 1
                $region72: #{linear_classifier_forward.1} parent=65 // loop_footer_branch
                  %2732 = sbr.rel target = $region68
                $region73: #{linear_classifier_forward.1} parent=65 // loop_exit
                  _
                %s2752 = sshrl.u32 %s2669, 1
                %s2753 = sand.u32 %s2669, 1
                %s2754 = smul.u32 %s2752, 2
                %s2755 = smul.u32 8, %s2754
                %s2756 = scalar_lea.vmem %s2662, %s2755 [#allocation2]
                %s2757 = smul.u32 8, %s2754
                %s2758 = scalar_lea.vmem %s2673, %s2757
                // While loop
                $region74: #{linear_classifier_forward.1} parent=65 // loop_pre_header
                  _
                $region75: #{linear_classifier_forward.1} parent=65 // loop_header
                  %s2760 = sphi 0, %s2762
                  %p2761 = scmp.ge.s32.totalorder %s2760, %s2753
                  %s2765 = sphi 0, %s2772
                  %s2766 = sphi %s2756, %s2775
                  %s2767 = sphi %s2758, %s2776
                $region76: #{linear_classifier_forward.1} parent=65 // loop_header_branch
                  %2764 = sbr.rel (%p2761) target = $region80
                $region77: #{linear_classifier_forward.1} parent=65 // loop_body
                  %v2768 = vld [vmem:[%s2766] sm:$0xff]
                  %2769 = vst [vmem:[%s2767] sm:$0xff] %v2768
                  %s2770 = sadd.s32 1, %s2765
                  %p2771 = scmp.ge.s32.totalorder %s2770, %s2753
                  %s2772 = scalar_select %p2771, 0, %s2770
                  %s2773 = smul.u32 %s2772, 8
                  %s2774 = smul.u32 %s2772, 8
                  %s2775 = scalar_lea.vmem %s2756, %s2773 [#allocation2]
                  %s2776 = scalar_lea.vmem %s2758, %s2774
                $region78: #{linear_classifier_forward.1} parent=65 // loop_footer
                  %s2762 = sadd.s32 %s2760, 1
                $region79: #{linear_classifier_forward.1} parent=65 // loop_footer_branch
                  %2759 = sbr.rel target = $region75
                $region80: #{linear_classifier_forward.1} parent=65 // loop_exit
                  _
              $region66: #{linear_classifier_forward.1} parent=43 // pred_fallthru
                _
              // Predicated region
              $region81: #{linear_classifier_forward.1} parent=43 // pred_check
                _
              $region82: #{linear_classifier_forward.1} parent=43 // pred_check_branch
                %2778 = sbr.rel target = $region84
              $region83: #{linear_classifier_forward.1} parent=43 // pred_region
                _
              $region84: #{linear_classifier_forward.1} parent=43 // pred_fallthru
                _
            $region44: #{linear_classifier_forward.1} parent=39 // pred_fallthru
              _
            // Predicated region
            $region45: #{linear_classifier_forward.1} parent=39 // pred_check
              _
            $region46: #{linear_classifier_forward.1} parent=39 // pred_check_branch
              %2680 = sbr.rel target = $region48
            $region47: #{linear_classifier_forward.1} parent=39 // pred_region
              %s2682 = ssub.s32 256, 1
              %s2683 = sshrl.u32 %s2669, 1
              // While loop
              $region49: #{linear_classifier_forward.1} parent=47 // loop_pre_header
                _
              $region50: #{linear_classifier_forward.1} parent=47 // loop_header
                %s2685 = sphi 0, %s2687
                %p2686 = scmp.ge.s32.totalorder %s2685, %s2683
                %s2690 = sphi 0, %s2699
                %s2691 = sphi %s2662, %s2702
                %s2692 = sphi %s2673, %s2703
              $region51: #{linear_classifier_forward.1} parent=47 // loop_header_branch
                %2689 = sbr.rel (%p2686) target = $region55
              $region52: #{linear_classifier_forward.1} parent=47 // loop_body
                %v2693 = vld [vmem:[%s2691] sm:%s2682]
                %2694 = vst [vmem:[%s2692] sm:%s2682] %v2693
                %v2695 = vld [vmem:[%s2691 + $0x8] sm:%s2682]
                %2696 = vst [vmem:[%s2692 + $0x8] sm:%s2682] %v2695
                %s2697 = sadd.s32 1, %s2690
                %p2698 = scmp.ge.s32.totalorder %s2697, %s2683
                %s2699 = scalar_select %p2698, 0, %s2697
                %s2700 = smul.u32 %s2699, 16
                %s2701 = smul.u32 %s2699, 16
                %s2702 = scalar_lea.vmem %s2662, %s2700 [#allocation2]
                %s2703 = scalar_lea.vmem %s2673, %s2701
              $region53: #{linear_classifier_forward.1} parent=47 // loop_footer
                %s2687 = sadd.s32 %s2685, 1
              $region54: #{linear_classifier_forward.1} parent=47 // loop_footer_branch
                %2684 = sbr.rel target = $region50
              $region55: #{linear_classifier_forward.1} parent=47 // loop_exit
                _
              %s2704 = sshrl.u32 %s2669, 1
              %s2705 = sand.u32 %s2669, 1
              %s2706 = smul.u32 %s2704, 2
              %s2707 = smul.u32 8, %s2706
              %s2708 = scalar_lea.vmem %s2662, %s2707 [#allocation2]
              %s2709 = smul.u32 8, %s2706
              %s2710 = scalar_lea.vmem %s2673, %s2709
              // While loop
              $region56: #{linear_classifier_forward.1} parent=47 // loop_pre_header
                _
              $region57: #{linear_classifier_forward.1} parent=47 // loop_header
                %s2712 = sphi 0, %s2714
                %p2713 = scmp.ge.s32.totalorder %s2712, %s2705
                %s2717 = sphi 0, %s2724
                %s2718 = sphi %s2708, %s2727
                %s2719 = sphi %s2710, %s2728
              $region58: #{linear_classifier_forward.1} parent=47 // loop_header_branch
                %2716 = sbr.rel (%p2713) target = $region62
              $region59: #{linear_classifier_forward.1} parent=47 // loop_body
                %v2720 = vld [vmem:[%s2718] sm:%s2682]
                %2721 = vst [vmem:[%s2719] sm:%s2682] %v2720
                %s2722 = sadd.s32 1, %s2717
                %p2723 = scmp.ge.s32.totalorder %s2722, %s2705
                %s2724 = scalar_select %p2723, 0, %s2722
                %s2725 = smul.u32 %s2724, 8
                %s2726 = smul.u32 %s2724, 8
                %s2727 = scalar_lea.vmem %s2708, %s2725 [#allocation2]
                %s2728 = scalar_lea.vmem %s2710, %s2726
              $region60: #{linear_classifier_forward.1} parent=47 // loop_footer
                %s2714 = sadd.s32 %s2712, 1
              $region61: #{linear_classifier_forward.1} parent=47 // loop_footer_branch
                %2711 = sbr.rel target = $region57
              $region62: #{linear_classifier_forward.1} parent=47 // loop_exit
                _
            $region48: #{linear_classifier_forward.1} parent=39 // pred_fallthru
              _
          $region40: #{linear_classifier_forward.1} parent=35 // pred_fallthru
            _
          %2779 = vnop
        $region36: #{linear_classifier_forward.1} parent=31 // pred_fallthru
          _
      $region32: #{linear_classifier_forward.1} parent=5 // pred_fallthru
        _
      %p2780 = scmp.le.s32.totalorder 2, %s9
      // Predicated region
      $region85: #{linear_classifier_forward.1} parent=5 // pred_check
        %p2781 = pneg %p2780
      $region86: #{linear_classifier_forward.1} parent=5 // pred_check_branch
        %2783 = sbr.rel (%p2781) target = $region88
      $region87: #{linear_classifier_forward.1} parent=5 // pred_region
        %s2784 = ssub.s32 %s9, 2
        // Predicated region
        $region89: #{linear_classifier_forward.1} parent=87 // pred_check
          %p2785 = pneg %p106
        $region90: #{linear_classifier_forward.1} parent=87 // pred_check_branch
          %2787 = sbr.rel (%p2785) target = $region92
        $region91: #{linear_classifier_forward.1} parent=87 // pred_region
          %s2788 = sand.u32 %s91, 1
          %s2789 = sand.u32 %s91, 1
          %s2790 = smul.addr %s2789, 16
          %s2791 = scalar_lea.vmem [#allocation2], %s2790
        $region92: #{linear_classifier_forward.1} parent=87 // pred_fallthru
          _
      $region88: #{linear_classifier_forward.1} parent=5 // pred_fallthru
        _
    $region6: #{linear_classifier_forward.1} parent=1 // loop_footer
      %s13 = sadd.s32 1, %s9
    $region7: #{linear_classifier_forward.1} parent=1 // loop_footer_branch
      %8 = sbr.rel target = $region3
    $region8: #{linear_classifier_forward.1} parent=1 // loop_exit
      _

</llo_original>
